<compile_context>
chip_gen: v7x
topology: tpu7x:2x2x1
jax: 0.10.0
libtpu: 0.0.40
codegen_flags: <defaults>
</compile_context>

<pallas_src>
import functools
import math

import jax
import jax.numpy as jnp
from jax.experimental import pallas as pl
from jax.experimental.pallas import tpu as pltpu

_LN_EPS = 1e-5
_INV_SQRT2 = 0.7071067811865476


def _round_up(x, m):
    return ((x + m - 1) // m) * m


def _pick_defaults():
    """Per-chip row-tile / VMEM-limit defaults (conservative fallback otherwise)."""
    try:
        kind = jax.devices()[0].device_kind.lower()
    except Exception:  # pragma: no cover - defensive only
        kind = ""
    if "v6" in kind:
        return 1024, 96 * 1024 * 1024
    if "v7" in kind:
        return 512, 48 * 1024 * 1024
    if "v5" in kind:
        return 768, 64 * 1024 * 1024
    return 512, 48 * 1024 * 1024


# --------------------------------------------------------------------------------------
# Kernel: conv (chunked MXU matmuls) + bias + LayerNorm + exact erf-GELU, fused.
# --------------------------------------------------------------------------------------
def _make_block_kernel(n_chunks, c_true, c_pad, tr, bf16_gelu):
    has_halo = n_chunks > 1

    def kernel(*refs):
        if has_halo:
            xm_ref, xh_ref, w_ref, b_ref, g_ref, be_ref, o_ref = refs
        else:
            xm_ref, w_ref, b_ref, g_ref, be_ref, o_ref = refs

        xm = xm_ref[0]                                            # (TR, S*Cin) bf16
        acc = jnp.dot(xm, w_ref[0], preferred_element_type=jnp.float32)

        if has_halo:
            xh = xh_ref[0]                                        # (halo, S*Cin) bf16
            row = jax.lax.broadcasted_iota(jnp.int32, (tr, 1), 0)
            for c in range(1, n_chunks):
                if c == 1:
                    # Shift the chunk-1 result up one row via the XLU instead of
                    # materializing a shifted LHS copy; patch the last row with the
                    # halo row's contribution (tiny matmul).
                    y_c = jnp.dot(xm, w_ref[1],
                                  preferred_element_type=jnp.float32)
                    y_s = pltpu.roll(y_c, shift=tr - 1, axis=0)   # row r <- y_c[r+1]
                    tail = jnp.dot(xh, w_ref[1],
                                   preferred_element_type=jnp.float32)[0:1, :]
                    acc = acc + jnp.where(row < tr - 1, y_s, tail)
                else:
                    # Rare general case (K > 2*S): explicit shifted-LHS copy.
                    shifted = jnp.concatenate([xm[c:, :], xh[:c, :]], axis=0)
                    acc = acc + jnp.dot(shifted, w_ref[c],
                                        preferred_element_type=jnp.float32)

        h = acc + b_ref[...]                                      # (TR, Cpad) f32
        # nn.Dropout is identity at inference time.
        # LayerNorm over the true channel count (padded lanes are exactly zero).
        inv_c = 1.0 / float(c_true)
        mean = jnp.sum(h, axis=-1, keepdims=True) * inv_c
        centered = h - mean
        if c_pad != c_true:
            lane = jax.lax.broadcasted_iota(jnp.int32, (1, c_pad), 1)
            centered = jnp.where(lane < c_true, centered, 0.0)
        var = jnp.sum(centered * centered, axis=-1, keepdims=True) * inv_c
        hn = centered * jax.lax.rsqrt(var + _LN_EPS) * g_ref[...] + be_ref[...]
        if bf16_gelu:
            # v6e/v7x option: 2x VALU packing for the erf polynomial (numerics drift).
            hn = hn.astype(jnp.bfloat16)
        # Exact erf-based GELU == torch.nn.GELU() default (approximate='none').
        y = 0.5 * hn * (1.0 + jax.lax.erf(hn * _INV_SQRT2))
        o_ref[0] = y.astype(o_ref.dtype)

    return kernel


# --------------------------------------------------------------------------------------
# Static planning: tile sizes + padded row counts for the whole block chain, so each
# block writes exactly the (time-padded) rows the next block reads (no HBM pad copy).
# --------------------------------------------------------------------------------------
def _plan_blocks(T, kernel_sizes, strides, dim, *, row_tile, small_d_row_tile):
    n = len(kernel_sizes)
    cpad = _round_up(dim, 128)

    t_true, t = [], T
    for k, s in zip(kernel_sizes, strides):
        t = (t - k) // s + 1
        assert t >= 1, "input too short for the conv stack"
        t_true.append(t)

    plans = [None] * n
    rows_needed = None                      # channels-last rows block i+1 consumes
    for i in range(n - 1, -1, -1):
        k, s = int(kernel_sizes[i]), int(strides[i])
        cin_pad = 1 if i == 0 else cpad
        cin_true = 1 if i == 0 else dim
        d = s * cin_pad
        n_chunks = pl.cdiv(k, s)
        halo = _round_up(n_chunks - 1, 16) if n_chunks > 1 else 0
        tout = t_true[i]
        out_rows = tout if i == n - 1 else rows_needed

        rt = row_tile if d >= 128 else max(row_tile, small_d_row_tile)
        tr_tile = min(_round_up(rt, 16), _round_up(out_rows, 16))
        if halo:
            tr_tile = _round_up(tr_tile, halo)      # halo blocks per tile is integral
        n_tiles = pl.cdiv(out_rows, tr_tile)

        tin_true = T if i == 0 else t_true[i - 1]
        # Halo blocks fully in-bounds; padded input always covers the true rows.
        in_rows = max(n_tiles * tr_tile + halo, pl.cdiv(tin_true, s))
        plans[i] = dict(K=k, S=s, cin_pad=cin_pad, cin_true=cin_true, D=d,
                        n_chunks=n_chunks, halo=halo, TR=tr_tile, nT=n_tiles,
                        Tr=in_rows, Tpad=in_rows * s, out_rows=out_rows,
                        Tout=tout, cpad=cpad, cout=dim)
        rows_needed = in_rows * s
    return plans, rows_needed               # rows_needed == padded rows of raw input


# --------------------------------------------------------------------------------------
# One-time parameter repacking (hoisted out of the forward path).
# --------------------------------------------------------------------------------------
def pack_feature_encoder_params(params, kernel_sizes, strides):
    """PyTorch-layout params -> MXU-friendly packed layout (done once at init)."""
    dim = params[0][0].shape[0]
    cpad = _round_up(dim, 128)
    packed, cin_pad = [], 1
    for (w, b, gamma, beta), k, s in zip(params, kernel_sizes, strides):
        cout, cin_true, kk = w.shape
        assert kk == k and cout == dim
        n_chunks = pl.cdiv(int(k), int(s))
        d = int(s) * cin_pad
        kp = n_chunks * int(s)
        wp = jnp.zeros((cpad, cin_pad, kp), jnp.float32)
        wp = wp.at[:cout, :cin_true, :k].set(w.astype(jnp.float32))
        # (Cout, Cin, K) -> (n_chunks, S*Cin_pad, Cpad); lane order s*Cin_pad + cin
        # matches the stride-folded activation rows.
        w_r = jnp.transpose(wp.reshape(cpad, cin_pad, n_chunks, int(s)), (2, 3, 1, 0))
        w_r = w_r.reshape(n_chunks, d, cpad).astype(jnp.bfloat16)

        def pad_vec(v):
            return jnp.zeros((1, cpad), jnp.float32).at[0, :cout].set(
                v.astype(jnp.float32))

        packed.append((w_r, pad_vec(b), pad_vec(gamma), pad_vec(beta)))
        cin_pad = cpad
    return packed


def init_feature_encoder_params(key, n_blocks, dim, kernel_sizes):
    """Deterministic params matching the PyTorch module shapes (Conv1d + LayerNorm)."""
    assert len(kernel_sizes) == n_blocks
    params, in_channel = [], 1
    for k in kernel_sizes:
        key, kw, kb = jax.random.split(key, 3)
        fan_in = in_channel * k
        bound = 1.0 / math.sqrt(fan_in)
        w = jax.random.uniform(kw, (dim, in_channel, k), jnp.float32, -bound, bound)
        b = jax.random.uniform(kb, (dim,), jnp.float32, -bound, bound)
        params.append((w, b, jnp.ones((dim,), jnp.float32),
                       jnp.zeros((dim,), jnp.float32)))
        in_channel = dim
    return params


# --------------------------------------------------------------------------------------
# Per-block pallas_call wrapper.
# --------------------------------------------------------------------------------------
def _feature_encoder_block(x, w_r, b2, g2, be2, plan, *, out_dtype, vmem_limit_bytes,
                           single_buffer_consts, bf16_gelu):
    B = x.shape[0]
    TR, nT, halo = plan["TR"], plan["nT"], plan["halo"]
    D, cpad, n_chunks = plan["D"], plan["cpad"], plan["n_chunks"]
    assert x.shape[1] == plan["Tpad"] and x.shape[2] == plan["cin_pad"], x.shape

    x = x.astype(jnp.bfloat16)                      # no-op for inter-block activations
    xr = x.reshape(B, plan["Tr"], D)                # free: stride folded into lanes

    # Constants (weights / bias / LN params) use a constant index_map -> fetched once
    # and VMEM-resident across the grid.  Optional single-buffering saves ~2 MiB/block.
    const_kw = {"pipeline_mode": pl.Buffered(1)} if single_buffer_consts else {}

    in_specs = [pl.BlockSpec((1, TR, D), lambda bb, t: (bb, t, 0))]
    inputs = [xr]
    if n_chunks > 1:
        bpt = TR // halo                            # halo blocks per main tile
        in_specs.append(pl.BlockSpec((1, halo, D),
                                     lambda bb, t, _b=bpt: (bb, (t + 1) * _b, 0)))
        inputs.append(xr)
    in_specs += [
        pl.BlockSpec((n_chunks, D, cpad), lambda bb, t: (0, 0, 0), **const_kw),
        pl.BlockSpec((1, cpad), lambda bb, t: (0, 0), **const_kw),
        pl.BlockSpec((1, cpad), lambda bb, t: (0, 0), **const_kw),
        pl.BlockSpec((1, cpad), lambda bb, t: (0, 0), **const_kw),
    ]
    inputs += [w_r, b2, g2, be2]

    use_bf16_gelu = bool(bf16_gelu) and out_dtype == jnp.bfloat16
    return pl.pallas_call(
        _make_block_kernel(n_chunks, plan["cout"], cpad, TR, use_bf16_gelu),
        out_shape=jax.ShapeDtypeStruct((B, plan["out_rows"], cpad), out_dtype),
        grid=(B, nT),
        in_specs=in_specs,
        out_specs=pl.BlockSpec((1, TR, cpad), lambda bb, t: (bb, t, 0)),
        compiler_params=pltpu.CompilerParams(
            dimension_semantics=("parallel", "parallel"),
            vmem_limit_bytes=int(vmem_limit_bytes)),
    )(*inputs)


def feature_encoder(x, packed_params, kernel_sizes, strides, dim, *,
                    row_tile=None, small_d_row_tile=2048, vmem_limit_bytes=None,
                    single_buffer_consts=False, bf16_gelu=False):
    """FeatureEncoder.forward with with_mask=False.  x: (B, T) -> (B, dim, T_final)."""
    n = len(packed_params)
    assert len(kernel_sizes) == n and len(strides) == n
    if row_tile is None or vmem_limit_bytes is None:
        rt_d, vm_d = _pick_defaults()
        row_tile = rt_d if row_tile is None else row_tile
        vmem_limit_bytes = vm_d if vmem_limit_bytes is None else vmem_limit_bytes

    plans, tpad0 = _plan_blocks(x.shape[1], kernel_sizes, strides, dim,
                                row_tile=row_tile, small_d_row_tile=small_d_row_tile)

    # Only the (tiny, Cin=1) raw input is zero-padded; every downstream activation is
    # produced already time-padded for its consumer (no per-block HBM pad round-trip).
    h = x.astype(jnp.bfloat16)[:, :, None]           # unsqueeze(1) -> (B, T, 1)
    if tpad0 > h.shape[1]:
        h = jnp.pad(h, ((0, 0), (0, tpad0 - h.shape[1]), (0, 0)))

    # TODO(synk): fuse adjacent blocks into one pallas_call to keep the intermediate
    # activation in VMEM (removes one HBM write+read of the largest activation).
    for i, (blk, plan) in enumerate(zip(packed_params, plans)):
        out_dtype = jnp.float32 if i == n - 1 else jnp.bfloat16
        h = _feature_encoder_block(h, *blk, plan, out_dtype=out_dtype,
                                   vmem_limit_bytes=vmem_limit_bytes,
                                   single_buffer_consts=single_buffer_consts,
                                   bf16_gelu=bf16_gelu)

    h = h[:, :, :dim]                                 # drop channel lane padding
    # TODO(synk): with_mask=True path (torch.multinomial start-id sampling + span
    # masking with mask_vector) is RNG/data-dependent; this is the with_mask=False
    # branch, which returns x directly.
    return jnp.transpose(h, (0, 2, 1))                # single NCW transpose at the end


# --------------------------------------------------------------------------------------
# Pure-JAX reference (same bf16-operand / f32-accumulate numerics) + demo.
# --------------------------------------------------------------------------------------
def _reference(x, params, kernel_sizes, strides):
    h = x[:, None, :].astype(jnp.bfloat16)            # NCW
    y = None
    for (w, b, g, be), k, s in zip(params, kernel_sizes, strides):
        y = jax.lax.conv_general_dilated(
            h, w.astype(jnp.bfloat16), window_strides=(s,), padding="VALID",
            dimension_numbers=("NCH", "OIH", "NCH"),
            preferred_element_type=jnp.float32)
        y = y + b[None, :, None]
        yt = jnp.transpose(y, (0, 2, 1))
        mean = jnp.mean(yt, axis=-1, keepdims=True)
        var = jnp.mean(jnp.square(yt - mean), axis=-1, keepdims=True)
        hn = (yt - mean) * jax.lax.rsqrt(var + _LN_EPS) * g + be
        hn = 0.5 * hn * (1.0 + jax.lax.erf(hn * _INV_SQRT2))
        y = jnp.transpose(hn, (0, 2, 1))
        h = y.astype(jnp.bfloat16)                     # inter-block bf16, like the kernel
    return y                                           # final block stays f32


if __name__ == "__main__":
    key = jax.random.PRNGKey(0)
    B, T = 2, 64
    n_blocks, dim = 2, 32
    kernel_sizes = (8, 4)
    strides = (4, 2)

    kx, kp = jax.random.split(key)
    x = jax.random.normal(kx, (B, T), jnp.float32)
    params = init_feature_encoder_params(kp, n_blocks, dim, kernel_sizes)
    packed = pack_feature_encoder_params(params, kernel_sizes, strides)

    # row_tile / small_d_row_tile = 16 only to exercise the multi-tile + halo + roll
    # paths at toy sizes; production: leave row_tile=None (per-chip default) or use
    # 512 (v7x) .. 1024-2048 (v6e), small_d_row_tile ~2048.
    fe = jax.jit(functools.partial(
        feature_encoder, kernel_sizes=kernel_sizes, strides=strides, dim=dim,
        row_tile=16, small_d_row_tile=16))
    out = jax.block_until_ready(fe(x, packed))

    # Expected T_final: ((64-8)//4+1 = 15) -> ((15-4)//2+1 = 6)
    assert out.shape == (B, dim, 6), out.shape
    ref = _reference(x, params, kernel_sizes, strides)
    assert jnp.allclose(out, ref, atol=2e-3, rtol=2e-3), \
        float(jnp.max(jnp.abs(out - ref)))

    print("KERNEL_OK")
</pallas_src>

<mosaic_0001>
module attributes {stable_mosaic.version = 11 : i64} {
  func.func @kernel(%arg0: i32, %arg1: i32, %arg2: memref<1x16x4xbf16, #tpu.memory_space<vmem>>, %arg3: memref<1x16x4xbf16, #tpu.memory_space<vmem>>, %arg4: memref<2x4x128xbf16, #tpu.memory_space<vmem>>, %arg5: memref<1x128xf32, #tpu.memory_space<vmem>>, %arg6: memref<1x128xf32, #tpu.memory_space<vmem>>, %arg7: memref<1x128xf32, #tpu.memory_space<vmem>>, %arg8: memref<1x16x128xbf16, #tpu.memory_space<vmem>>) attributes {dimension_semantics = [#tpu.dimension_semantics<parallel>, #tpu.dimension_semantics<parallel>], iteration_bounds = array<i64: 2, 4>, scalar_prefetch = 0 : i64, scratch_operands = 0 : i64, tpu.core_type = #tpu.core_type<tc>, window_params = [{transform_indices = @transform_0, window_bounds = array<i64: 1, 16, 4>}, {transform_indices = @transform_1, window_bounds = array<i64: 1, 16, 4>}, {pipeline_mode = #tpu.pipeline_mode<synchronous>, transform_indices = @transform_2, window_bounds = array<i64: 2, 4, 128>}, {pipeline_mode = #tpu.pipeline_mode<synchronous>, transform_indices = @transform_3, window_bounds = array<i64: 1, 128>}, {pipeline_mode = #tpu.pipeline_mode<synchronous>, transform_indices = @transform_4, window_bounds = array<i64: 1, 128>}, {pipeline_mode = #tpu.pipeline_mode<synchronous>, transform_indices = @transform_5, window_bounds = array<i64: 1, 128>}, {transform_indices = @transform_6, window_bounds = array<i64: 1, 16, 128>}]} {
    %c0 = arith.constant 0 : index
    %c0_0 = arith.constant 0 : index
    %c0_1 = arith.constant 0 : index
    %0 = vector.load %arg2[%c0, %c0_0, %c0_1] : memref<1x16x4xbf16, #tpu.memory_space<vmem>>, vector<1x16x4xbf16>
    %1 = vector.shape_cast %0 : vector<1x16x4xbf16> to vector<16x4xbf16>
    %c0_2 = arith.constant 0 : index
    %c0_3 = arith.constant 0 : index
    %c0_4 = arith.constant 0 : index
    %2 = vector.load %arg4[%c0_2, %c0_3, %c0_4] : memref<2x4x128xbf16, #tpu.memory_space<vmem>>, vector<1x4x128xbf16>
    %3 = vector.shape_cast %2 : vector<1x4x128xbf16> to vector<4x128xbf16>
    %cst = arith.constant dense<0.000000e+00> : vector<16x128xf32>
    %4 = tpu.matmul %1, %3, %cst {dimension_numbers = #tpu.dot_dimension_numbers<[1], [0], [0], [1], [0, 0, 1, 1], [], []>} : vector<16x4xbf16>, vector<4x128xbf16>, vector<16x128xf32> -> vector<16x128xf32>
    %c0_5 = arith.constant 0 : index
    %c0_6 = arith.constant 0 : index
    %c0_7 = arith.constant 0 : index
    %5 = vector.load %arg3[%c0_5, %c0_6, %c0_7] : memref<1x16x4xbf16, #tpu.memory_space<vmem>>, vector<1x16x4xbf16>
    %6 = vector.shape_cast %5 : vector<1x16x4xbf16> to vector<16x4xbf16>
    %7 = tpu.iota {dimensions = array<i32: 0>} : vector<16x1xi32>
    %c1 = arith.constant 1 : index
    %c0_8 = arith.constant 0 : index
    %c0_9 = arith.constant 0 : index
    %8 = vector.load %arg4[%c1, %c0_8, %c0_9] : memref<2x4x128xbf16, #tpu.memory_space<vmem>>, vector<1x4x128xbf16>
    %9 = vector.shape_cast %8 : vector<1x4x128xbf16> to vector<4x128xbf16>
    %cst_10 = arith.constant dense<0.000000e+00> : vector<16x128xf32>
    %10 = tpu.matmul %1, %9, %cst_10 {dimension_numbers = #tpu.dot_dimension_numbers<[1], [0], [0], [1], [0, 0, 1, 1], [], []>} : vector<16x4xbf16>, vector<4x128xbf16>, vector<16x128xf32> -> vector<16x128xf32>
    %c15_i32 = arith.constant 15 : i32
    %11 = tpu.dynamic_rotate %10 by %c15_i32 dim 0 : vector<16x128xf32>, i32 -> vector<16x128xf32>
    %c1_11 = arith.constant 1 : index
    %c0_12 = arith.constant 0 : index
    %c0_13 = arith.constant 0 : index
    %12 = vector.load %arg4[%c1_11, %c0_12, %c0_13] : memref<2x4x128xbf16, #tpu.memory_space<vmem>>, vector<1x4x128xbf16>
    %13 = vector.shape_cast %12 : vector<1x4x128xbf16> to vector<4x128xbf16>
    %cst_14 = arith.constant dense<0.000000e+00> : vector<16x128xf32>
    %14 = tpu.matmul %6, %13, %cst_14 {dimension_numbers = #tpu.dot_dimension_numbers<[1], [0], [0], [1], [0, 0, 1, 1], [], []>} : vector<16x4xbf16>, vector<4x128xbf16>, vector<16x128xf32> -> vector<16x128xf32>
    %15 = vector.extract_strided_slice %14 {offsets = [0, 0], sizes = [1, 128], strides = [1, 1]} : vector<16x128xf32> to vector<1x128xf32>
    %c15_i32_15 = arith.constant 15 : i32
    %16 = vector.broadcast %c15_i32_15 : i32 to vector<16x1xi32>
    %17 = arith.cmpi slt, %7, %16 : vector<16x1xi32>
    %18 = vector.shape_cast %17 : vector<16x1xi1> to vector<16x1xi1>
    %19 = vector.broadcast %18 : vector<16x1xi1> to vector<16x128xi1>
    %20 = vector.shape_cast %15 : vector<1x128xf32> to vector<1x128xf32>
    %21 = vector.broadcast %20 : vector<1x128xf32> to vector<16x128xf32>
    %22 = arith.select %19, %11, %21 : vector<16x128xi1>, vector<16x128xf32>
    %23 = arith.addf %4, %22 : vector<16x128xf32>
    %c0_16 = arith.constant 0 : index
    %c0_17 = arith.constant 0 : index
    %24 = vector.load %arg5[%c0_16, %c0_17] : memref<1x128xf32, #tpu.memory_space<vmem>>, vector<1x128xf32>
    %25 = vector.broadcast %24 : vector<1x128xf32> to vector<16x128xf32>
    %26 = arith.addf %23, %25 : vector<16x128xf32>
    %cst_18 = arith.constant dense<0.000000e+00> : vector<16xf32>
    %27 = vector.multi_reduction <add>, %26, %cst_18 [1] : vector<16x128xf32> to vector<16xf32>
    %28 = vector.shape_cast %27 : vector<16xf32> to vector<16x1xf32>
    %cst_19 = arith.constant 3.125000e-02 : f32
    %29 = vector.broadcast %cst_19 : f32 to vector<16x1xf32>
    %30 = arith.mulf %28, %29 : vector<16x1xf32>
    %31 = vector.broadcast %30 : vector<16x1xf32> to vector<16x128xf32>
    %32 = arith.subf %26, %31 : vector<16x128xf32>
    %33 = tpu.iota {dimensions = array<i32: 1>} : vector<1x128xi32>
    %c32_i32 = arith.constant 32 : i32
    %34 = vector.broadcast %c32_i32 : i32 to vector<1x128xi32>
    %35 = arith.cmpi slt, %33, %34 : vector<1x128xi32>
    %cst_20 = arith.constant 0.000000e+00 : f32
    %36 = vector.shape_cast %35 : vector<1x128xi1> to vector<1x128xi1>
    %37 = vector.broadcast %36 : vector<1x128xi1> to vector<16x128xi1>
    %38 = vector.broadcast %cst_20 : f32 to vector<16x128xf32>
    %39 = arith.select %37, %32, %38 : vector<16x128xi1>, vector<16x128xf32>
    %40 = arith.mulf %39, %39 : vector<16x128xf32>
    %cst_21 = arith.constant dense<0.000000e+00> : vector<16xf32>
    %41 = vector.multi_reduction <add>, %40, %cst_21 [1] : vector<16x128xf32> to vector<16xf32>
    %42 = vector.shape_cast %41 : vector<16xf32> to vector<16x1xf32>
    %cst_22 = arith.constant 3.125000e-02 : f32
    %43 = vector.broadcast %cst_22 : f32 to vector<16x1xf32>
    %44 = arith.mulf %42, %43 : vector<16x1xf32>
    %cst_23 = arith.constant 9.99999974E-6 : f32
    %45 = vector.broadcast %cst_23 : f32 to vector<16x1xf32>
    %46 = arith.addf %44, %45 : vector<16x1xf32>
    %47 = math.rsqrt %46 : vector<16x1xf32>
    %48 = vector.broadcast %47 : vector<16x1xf32> to vector<16x128xf32>
    %49 = arith.mulf %39, %48 : vector<16x128xf32>
    %c0_24 = arith.constant 0 : index
    %c0_25 = arith.constant 0 : index
    %50 = vector.load %arg6[%c0_24, %c0_25] : memref<1x128xf32, #tpu.memory_space<vmem>>, vector<1x128xf32>
    %51 = vector.broadcast %50 : vector<1x128xf32> to vector<16x128xf32>
    %52 = arith.mulf %49, %51 : vector<16x128xf32>
    %c0_26 = arith.constant 0 : index
    %c0_27 = arith.constant 0 : index
    %53 = vector.load %arg7[%c0_26, %c0_27] : memref<1x128xf32, #tpu.memory_space<vmem>>, vector<1x128xf32>
    %54 = vector.broadcast %53 : vector<1x128xf32> to vector<16x128xf32>
    %55 = arith.addf %52, %54 : vector<16x128xf32>
    %cst_28 = arith.constant 5.000000e-01 : f32
    %56 = vector.broadcast %cst_28 : f32 to vector<16x128xf32>
    %57 = arith.mulf %56, %55 : vector<16x128xf32>
    %cst_29 = arith.constant 0.707106769 : f32
    %58 = vector.broadcast %cst_29 : f32 to vector<16x128xf32>
    %59 = arith.mulf %55, %58 : vector<16x128xf32>
    %60 = math.erf %59 : vector<16x128xf32>
    %cst_30 = arith.constant 1.000000e+00 : f32
    %61 = vector.broadcast %cst_30 : f32 to vector<16x128xf32>
    %62 = arith.addf %61, %60 : vector<16x128xf32>
    %63 = arith.mulf %57, %62 : vector<16x128xf32>
    %64 = arith.truncf %63 : vector<16x128xf32> to vector<16x128xbf16>
    %c0_31 = arith.constant 0 : index
    %c0_32 = arith.constant 0 : index
    %c0_33 = arith.constant 0 : index
    %65 = vector.load %arg8[%c0_31, %c0_32, %c0_33] : memref<1x16x128xbf16, #tpu.memory_space<vmem>>, vector<1x16x128xbf16>
    %66 = vector.shape_cast %65 : vector<1x16x128xbf16> to vector<16x128xbf16>
    %67 = vector.shape_cast %64 : vector<16x128xbf16> to vector<1x16x128xbf16>
    tpu.vector_store %arg8[%c0_31, %c0_32, %c0_33], %67 {strides = array<i32>} : memref<1x16x128xbf16, #tpu.memory_space<vmem>>, vector<1x16x128xbf16>,
    return
  }
  func.func @transform_0(%arg0: i32, %arg1: i32) -> (i32, i32, i32) {
    %c0_i32 = arith.constant 0 : i32
    %c0_i32_0 = arith.constant 0 : i32
    return %arg0, %arg1, %c0_i32 : i32, i32, i32
  }
  func.func @transform_1(%arg0: i32, %arg1: i32) -> (i32, i32, i32) {
    %c1_i32 = arith.constant 1 : i32
    %0 = arith.addi %arg1, %c1_i32 : i32
    %c1_i32_0 = arith.constant 1 : i32
    %1 = arith.muli %0, %c1_i32_0 : i32
    %c0_i32 = arith.constant 0 : i32
    %c0_i32_1 = arith.constant 0 : i32
    return %arg0, %1, %c0_i32 : i32, i32, i32
  }
  func.func @transform_2(%arg0: i32, %arg1: i32) -> (i32, i32, i32) {
    %c0_i32 = arith.constant 0 : i32
    %c0_i32_0 = arith.constant 0 : i32
    %c0_i32_1 = arith.constant 0 : i32
    %c0_i32_2 = arith.constant 0 : i32
    return %c0_i32, %c0_i32_0, %c0_i32_1 : i32, i32, i32
  }
  func.func @transform_3(%arg0: i32, %arg1: i32) -> (i32, i32) {
    %c0_i32 = arith.constant 0 : i32
    %c0_i32_0 = arith.constant 0 : i32
    %c0_i32_1 = arith.constant 0 : i32
    return %c0_i32, %c0_i32_0 : i32, i32
  }
  func.func @transform_4(%arg0: i32, %arg1: i32) -> (i32, i32) {
    %c0_i32 = arith.constant 0 : i32
    %c0_i32_0 = arith.constant 0 : i32
    %c0_i32_1 = arith.constant 0 : i32
    return %c0_i32, %c0_i32_0 : i32, i32
  }
  func.func @transform_5(%arg0: i32, %arg1: i32) -> (i32, i32) {
    %c0_i32 = arith.constant 0 : i32
    %c0_i32_0 = arith.constant 0 : i32
    %c0_i32_1 = arith.constant 0 : i32
    return %c0_i32, %c0_i32_0 : i32, i32
  }
  func.func @transform_6(%arg0: i32, %arg1: i32) -> (i32, i32, i32) {
    %c0_i32 = arith.constant 0 : i32
    %c0_i32_0 = arith.constant 0 : i32
    return %arg0, %arg1, %c0_i32 : i32, i32, i32
  }
}

module attributes {stable_mosaic.version = 11 : i64} {
  func.func @kernel(%arg0: i32, %arg1: i32, %arg2: memref<1x16x256xbf16, #tpu.memory_space<vmem>>, %arg3: memref<1x16x256xbf16, #tpu.memory_space<vmem>>, %arg4: memref<2x256x128xbf16, #tpu.memory_space<vmem>>, %arg5: memref<1x128xf32, #tpu.memory_space<vmem>>, %arg6: memref<1x128xf32, #tpu.memory_space<vmem>>, %arg7: memref<1x128xf32, #tpu.memory_space<vmem>>, %arg8: memref<1x16x128xf32, #tpu.memory_space<vmem>>) attributes {dimension_semantics = [#tpu.dimension_semantics<parallel>, #tpu.dimension_semantics<parallel>], iteration_bounds = array<i64: 2, 1>, scalar_prefetch = 0 : i64, scratch_operands = 0 : i64, tpu.core_type = #tpu.core_type<tc>, window_params = [{transform_indices = @transform_0, window_bounds = array<i64: 1, 16, 256>}, {transform_indices = @transform_1, window_bounds = array<i64: 1, 16, 256>}, {pipeline_mode = #tpu.pipeline_mode<synchronous>, transform_indices = @transform_2, window_bounds = array<i64: 2, 256, 128>}, {pipeline_mode = #tpu.pipeline_mode<synchronous>, transform_indices = @transform_3, window_bounds = array<i64: 1, 128>}, {pipeline_mode = #tpu.pipeline_mode<synchronous>, transform_indices = @transform_4, window_bounds = array<i64: 1, 128>}, {pipeline_mode = #tpu.pipeline_mode<synchronous>, transform_indices = @transform_5, window_bounds = array<i64: 1, 128>}, {transform_indices = @transform_6, window_bounds = array<i64: 1, 16, 128>}]} {
    %c0 = arith.constant 0 : index
    %c0_0 = arith.constant 0 : index
    %c0_1 = arith.constant 0 : index
    %0 = vector.load %arg2[%c0, %c0_0, %c0_1] : memref<1x16x256xbf16, #tpu.memory_space<vmem>>, vector<1x16x256xbf16>
    %1 = vector.shape_cast %0 : vector<1x16x256xbf16> to vector<16x256xbf16>
    %c0_2 = arith.constant 0 : index
    %c0_3 = arith.constant 0 : index
    %c0_4 = arith.constant 0 : index
    %2 = vector.load %arg4[%c0_2, %c0_3, %c0_4] : memref<2x256x128xbf16, #tpu.memory_space<vmem>>, vector<1x256x128xbf16>
    %3 = vector.shape_cast %2 : vector<1x256x128xbf16> to vector<256x128xbf16>
    %cst = arith.constant dense<0.000000e+00> : vector<16x128xf32>
    %4 = tpu.matmul %1, %3, %cst {dimension_numbers = #tpu.dot_dimension_numbers<[1], [0], [0], [1], [0, 0, 1, 1], [], []>} : vector<16x256xbf16>, vector<256x128xbf16>, vector<16x128xf32> -> vector<16x128xf32>
    %c0_5 = arith.constant 0 : index
    %c0_6 = arith.constant 0 : index
    %c0_7 = arith.constant 0 : index
    %5 = vector.load %arg3[%c0_5, %c0_6, %c0_7] : memref<1x16x256xbf16, #tpu.memory_space<vmem>>, vector<1x16x256xbf16>
    %6 = vector.shape_cast %5 : vector<1x16x256xbf16> to vector<16x256xbf16>
    %7 = tpu.iota {dimensions = array<i32: 0>} : vector<16x1xi32>
    %c1 = arith.constant 1 : index
    %c0_8 = arith.constant 0 : index
    %c0_9 = arith.constant 0 : index
    %8 = vector.load %arg4[%c1, %c0_8, %c0_9] : memref<2x256x128xbf16, #tpu.memory_space<vmem>>, vector<1x256x128xbf16>
    %9 = vector.shape_cast %8 : vector<1x256x128xbf16> to vector<256x128xbf16>
    %cst_10 = arith.constant dense<0.000000e+00> : vector<16x128xf32>
    %10 = tpu.matmul %1, %9, %cst_10 {dimension_numbers = #tpu.dot_dimension_numbers<[1], [0], [0], [1], [0, 0, 1, 1], [], []>} : vector<16x256xbf16>, vector<256x128xbf16>, vector<16x128xf32> -> vector<16x128xf32>
    %c15_i32 = arith.constant 15 : i32
    %11 = tpu.dynamic_rotate %10 by %c15_i32 dim 0 : vector<16x128xf32>, i32 -> vector<16x128xf32>
    %c1_11 = arith.constant 1 : index
    %c0_12 = arith.constant 0 : index
    %c0_13 = arith.constant 0 : index
    %12 = vector.load %arg4[%c1_11, %c0_12, %c0_13] : memref<2x256x128xbf16, #tpu.memory_space<vmem>>, vector<1x256x128xbf16>
    %13 = vector.shape_cast %12 : vector<1x256x128xbf16> to vector<256x128xbf16>
    %cst_14 = arith.constant dense<0.000000e+00> : vector<16x128xf32>
    %14 = tpu.matmul %6, %13, %cst_14 {dimension_numbers = #tpu.dot_dimension_numbers<[1], [0], [0], [1], [0, 0, 1, 1], [], []>} : vector<16x256xbf16>, vector<256x128xbf16>, vector<16x128xf32> -> vector<16x128xf32>
    %15 = vector.extract_strided_slice %14 {offsets = [0, 0], sizes = [1, 128], strides = [1, 1]} : vector<16x128xf32> to vector<1x128xf32>
    %c15_i32_15 = arith.constant 15 : i32
    %16 = vector.broadcast %c15_i32_15 : i32 to vector<16x1xi32>
    %17 = arith.cmpi slt, %7, %16 : vector<16x1xi32>
    %18 = vector.shape_cast %17 : vector<16x1xi1> to vector<16x1xi1>
    %19 = vector.broadcast %18 : vector<16x1xi1> to vector<16x128xi1>
    %20 = vector.shape_cast %15 : vector<1x128xf32> to vector<1x128xf32>
    %21 = vector.broadcast %20 : vector<1x128xf32> to vector<16x128xf32>
    %22 = arith.select %19, %11, %21 : vector<16x128xi1>, vector<16x128xf32>
    %23 = arith.addf %4, %22 : vector<16x128xf32>
    %c0_16 = arith.constant 0 : index
    %c0_17 = arith.constant 0 : index
    %24 = vector.load %arg5[%c0_16, %c0_17] : memref<1x128xf32, #tpu.memory_space<vmem>>, vector<1x128xf32>
    %25 = vector.broadcast %24 : vector<1x128xf32> to vector<16x128xf32>
    %26 = arith.addf %23, %25 : vector<16x128xf32>
    %cst_18 = arith.constant dense<0.000000e+00> : vector<16xf32>
    %27 = vector.multi_reduction <add>, %26, %cst_18 [1] : vector<16x128xf32> to vector<16xf32>
    %28 = vector.shape_cast %27 : vector<16xf32> to vector<16x1xf32>
    %cst_19 = arith.constant 3.125000e-02 : f32
    %29 = vector.broadcast %cst_19 : f32 to vector<16x1xf32>
    %30 = arith.mulf %28, %29 : vector<16x1xf32>
    %31 = vector.broadcast %30 : vector<16x1xf32> to vector<16x128xf32>
    %32 = arith.subf %26, %31 : vector<16x128xf32>
    %33 = tpu.iota {dimensions = array<i32: 1>} : vector<1x128xi32>
    %c32_i32 = arith.constant 32 : i32
    %34 = vector.broadcast %c32_i32 : i32 to vector<1x128xi32>
    %35 = arith.cmpi slt, %33, %34 : vector<1x128xi32>
    %cst_20 = arith.constant 0.000000e+00 : f32
    %36 = vector.shape_cast %35 : vector<1x128xi1> to vector<1x128xi1>
    %37 = vector.broadcast %36 : vector<1x128xi1> to vector<16x128xi1>
    %38 = vector.broadcast %cst_20 : f32 to vector<16x128xf32>
    %39 = arith.select %37, %32, %38 : vector<16x128xi1>, vector<16x128xf32>
    %40 = arith.mulf %39, %39 : vector<16x128xf32>
    %cst_21 = arith.constant dense<0.000000e+00> : vector<16xf32>
    %41 = vector.multi_reduction <add>, %40, %cst_21 [1] : vector<16x128xf32> to vector<16xf32>
    %42 = vector.shape_cast %41 : vector<16xf32> to vector<16x1xf32>
    %cst_22 = arith.constant 3.125000e-02 : f32
    %43 = vector.broadcast %cst_22 : f32 to vector<16x1xf32>
    %44 = arith.mulf %42, %43 : vector<16x1xf32>
    %cst_23 = arith.constant 9.99999974E-6 : f32
    %45 = vector.broadcast %cst_23 : f32 to vector<16x1xf32>
    %46 = arith.addf %44, %45 : vector<16x1xf32>
    %47 = math.rsqrt %46 : vector<16x1xf32>
    %48 = vector.broadcast %47 : vector<16x1xf32> to vector<16x128xf32>
    %49 = arith.mulf %39, %48 : vector<16x128xf32>
    %c0_24 = arith.constant 0 : index
    %c0_25 = arith.constant 0 : index
    %50 = vector.load %arg6[%c0_24, %c0_25] : memref<1x128xf32, #tpu.memory_space<vmem>>, vector<1x128xf32>
    %51 = vector.broadcast %50 : vector<1x128xf32> to vector<16x128xf32>
    %52 = arith.mulf %49, %51 : vector<16x128xf32>
    %c0_26 = arith.constant 0 : index
    %c0_27 = arith.constant 0 : index
    %53 = vector.load %arg7[%c0_26, %c0_27] : memref<1x128xf32, #tpu.memory_space<vmem>>, vector<1x128xf32>
    %54 = vector.broadcast %53 : vector<1x128xf32> to vector<16x128xf32>
    %55 = arith.addf %52, %54 : vector<16x128xf32>
    %cst_28 = arith.constant 5.000000e-01 : f32
    %56 = vector.broadcast %cst_28 : f32 to vector<16x128xf32>
    %57 = arith.mulf %56, %55 : vector<16x128xf32>
    %cst_29 = arith.constant 0.707106769 : f32
    %58 = vector.broadcast %cst_29 : f32 to vector<16x128xf32>
    %59 = arith.mulf %55, %58 : vector<16x128xf32>
    %60 = math.erf %59 : vector<16x128xf32>
    %cst_30 = arith.constant 1.000000e+00 : f32
    %61 = vector.broadcast %cst_30 : f32 to vector<16x128xf32>
    %62 = arith.addf %61, %60 : vector<16x128xf32>
    %63 = arith.mulf %57, %62 : vector<16x128xf32>
    %c0_31 = arith.constant 0 : index
    %c0_32 = arith.constant 0 : index
    %c0_33 = arith.constant 0 : index
    %64 = vector.load %arg8[%c0_31, %c0_32, %c0_33] : memref<1x16x128xf32, #tpu.memory_space<vmem>>, vector<1x16x128xf32>
    %65 = vector.shape_cast %64 : vector<1x16x128xf32> to vector<16x128xf32>
    %66 = vector.shape_cast %63 : vector<16x128xf32> to vector<1x16x128xf32>
    tpu.vector_store %arg8[%c0_31, %c0_32, %c0_33], %66 {strides = array<i32>} : memref<1x16x128xf32, #tpu.memory_space<vmem>>, vector<1x16x128xf32>,
    return
  }
  func.func @transform_0(%arg0: i32, %arg1: i32) -> (i32, i32, i32) {
    %c0_i32 = arith.constant 0 : i32
    %c0_i32_0 = arith.constant 0 : i32
    return %arg0, %arg1, %c0_i32 : i32, i32, i32
  }
  func.func @transform_1(%arg0: i32, %arg1: i32) -> (i32, i32, i32) {
    %c1_i32 = arith.constant 1 : i32
    %0 = arith.addi %arg1, %c1_i32 : i32
    %c1_i32_0 = arith.constant 1 : i32
    %1 = arith.muli %0, %c1_i32_0 : i32
    %c0_i32 = arith.constant 0 : i32
    %c0_i32_1 = arith.constant 0 : i32
    return %arg0, %1, %c0_i32 : i32, i32, i32
  }
  func.func @transform_2(%arg0: i32, %arg1: i32) -> (i32, i32, i32) {
    %c0_i32 = arith.constant 0 : i32
    %c0_i32_0 = arith.constant 0 : i32
    %c0_i32_1 = arith.constant 0 : i32
    %c0_i32_2 = arith.constant 0 : i32
    return %c0_i32, %c0_i32_0, %c0_i32_1 : i32, i32, i32
  }
  func.func @transform_3(%arg0: i32, %arg1: i32) -> (i32, i32) {
    %c0_i32 = arith.constant 0 : i32
    %c0_i32_0 = arith.constant 0 : i32
    %c0_i32_1 = arith.constant 0 : i32
    return %c0_i32, %c0_i32_0 : i32, i32
  }
  func.func @transform_4(%arg0: i32, %arg1: i32) -> (i32, i32) {
    %c0_i32 = arith.constant 0 : i32
    %c0_i32_0 = arith.constant 0 : i32
    %c0_i32_1 = arith.constant 0 : i32
    return %c0_i32, %c0_i32_0 : i32, i32
  }
  func.func @transform_5(%arg0: i32, %arg1: i32) -> (i32, i32) {
    %c0_i32 = arith.constant 0 : i32
    %c0_i32_0 = arith.constant 0 : i32
    %c0_i32_1 = arith.constant 0 : i32
    return %c0_i32, %c0_i32_0 : i32, i32
  }
  func.func @transform_6(%arg0: i32, %arg1: i32) -> (i32, i32, i32) {
    %c0_i32 = arith.constant 0 : i32
    %c0_i32_0 = arith.constant 0 : i32
    return %arg0, %arg1, %c0_i32 : i32, i32, i32
  }
}

</mosaic_0001>

<llo_original>
// kernel: feature_encoder.2
$region0: #{feature_encoder.2}
  #allocation0 [shape = 'u32[]', space=smem, size = 0x4, offset = 0x4, fixed_abs, tag = 'smem constant byte address 0x4 - core index']
  #allocation1 [shape = 'u32[144,128]{1,0:T(1,128)}', space=vmem, size = 0x12000, scoped, tag = 'internal scratch']
  %s0 = inlined_call_operand.vmem [shape: bf16[2,80,4], index: 0, kind: input, shape index: {}, may-alias: {0,1}]
  %s1 = inlined_call_operand.vmem [shape: bf16[2,80,4], index: 1, kind: input, shape index: {}, may-alias: {0,1}]
  %s2 = inlined_call_operand.hbm [shape: bf16[2,4,128], index: 2, kind: input, shape index: {}]
  %s3 = inlined_call_operand.hbm [shape: f32[1,128], index: 3, kind: input, shape index: {}]
  %s4 = inlined_call_operand.hbm [shape: f32[1,128], index: 4, kind: input, shape index: {}]
  %s5 = inlined_call_operand.hbm [shape: f32[1,128], index: 5, kind: input, shape index: {}]
  %s6 = inlined_call_operand.vmem [shape: bf16[2,64,128], index: 6, kind: output, shape index: {}]
  %s7 = sld [smem:[#allocation0]]
  $region73: #{feature_encoder.2} parent=0
    _
  %s9 = ssub.s32 1, %s7
  %s10 = scalar_select 0, %s9, %s7
  $region1: #{feature_encoder.2} parent=0
    #allocation2 [shape = 'u8[2048]{0}', space=vmem, size = 0x800, scoped, tag = 'input window, operand 2, single buffered']
    #allocation3 [shape = 's32[2]{0}', space=sflag, size = 0x8, scoped, tag = 'scoped memory for feature_encoder.2']
    #allocation4 [shape = 'u8[512]{0}', space=vmem, size = 0x400, scoped, tag = 'input window, operand 3, single buffered']
    #allocation5 [shape = 's32[1]{0}', space=sflag, size = 0x4, scoped, tag = 'scoped memory for feature_encoder.2']
    #allocation6 [shape = 'u8[512]{0}', space=vmem, size = 0x400, scoped, tag = 'input window, operand 4, single buffered']
    #allocation7 [shape = 'u8[512]{0}', space=vmem, size = 0x400, scoped, tag = 'input window, operand 5, single buffered']
    #allocation8 [shape = 's32[1]{0}', space=sflag, size = 0x4, scoped, tag = 'scoped memory for feature_encoder.2']
    %11 = vsyncpa [#allocation3], 0
    %12 = vsyncpa [#allocation5], 0
    %13 = vsyncpa [#allocation8], 0
    loop: start=0, step=1, limit=10
    $region2: #{feature_encoder.2} parent=1 // loop_pre_header
      _
    $region3: #{feature_encoder.2} parent=1 // loop_header
      %s15 = sphi 0, %s19
      %p16 = scmp.ge.s32.totalorder %s15, 10
      %s22 = sphi 0, %s34
      %s23 = sphi 0, %s30
      %s24 = sphi 0, %s22
      %s25 = sphi 0, %s23
      %s26 = sphi 0, %s24
      %s27 = sphi 0, %s25
      %s39 = sphi 0, %s41
      %s42 = sphi 0, %s39
      %s43 = sphi 0, %s42
      %s59 = sphi 0, %s43
      %s69 = sphi 0, %s71
      %s72 = sphi 0, %s69
      %s73 = sphi 0, %s72
      %s89 = sphi 0, %s73
      %s93 = sphi 0, %s93
      %s95 = sphi 0, %s93
      %s96 = sphi 0, %s95
      %s110 = sphi 0, %s96
      %s114 = sphi 0, %s114
      %s116 = sphi 0, %s114
      %s117 = sphi 0, %s116
      %s131 = sphi 0, %s117
      %s135 = sphi 0, %s135
      %s137 = sphi 0, %s135
      %s138 = sphi 0, %s137
      %s152 = sphi 0, %s138
      %s156 = sphi 0, %s156
      %s158 = sphi 0, %s156
      %s159 = sphi 0, %s158
      %s173 = sphi 0, %s159
      %s181 = sphi 0, %s183
      %s184 = sphi 0, %s181
      %s185 = sphi 0, %s184
      %s201 = sphi 0, %s185
    $region4: #{feature_encoder.2} parent=1 // loop_header_branch
      %18 = sbr.rel (%p16) target = $region8
    $region5: #{feature_encoder.2} parent=1 // loop_body
      %s20 = ssub.s32 %s15, 1
      %s21 = ssub.s32 %s15, 2
      %s28 = sadd.s32 1, %s23
      %p29 = scmp.ge.s32.totalorder %s28, 4
      %s30 = scalar_select %p29, 0, %s28
      %s31 = sadd.s32 1, %s22
      %s32 = scalar_select %p29, %s31, %s22
      %p33 = scmp.ge.s32.totalorder %s32, 2
      %s34 = scalar_select %p33, 0, %s32
      %s35 = ssub.s32 %s22, %s34
      %s36 = ssub.s32 %s23, %s30
      %s37 = sor.u32 %s35, %s36
      %p38 = scmp.eq.s32.totalorder %s37, 0
      %s40 = sadd.s32 %s39, 1
      %s41 = scalar_select %p38, %s39, %s40
      %p44 = pneg %p38
      %p45 = scmp.eq.s32.totalorder %s15, 7
      %p46 = por %p44, %p45
      %p47 = scmp.ne.s32.totalorder %s39, %s42
      %p48 = scmp.eq.s32.totalorder %s15, 0
      %p49 = por %p47, %p48
      %p50 = scmp.ne.s32.totalorder %s39, %s42
      %p51 = scmp.eq.s32.totalorder %s20, 7
      %p52 = por %p50, %p51
      %p53 = scmp.ne.s32.totalorder %s42, %s43
      %p54 = scmp.eq.s32.totalorder %s20, 0
      %p55 = por %p53, %p54
      %p56 = scmp.ne.s32.totalorder %s42, %s43
      %p57 = scmp.eq.s32.totalorder %s21, 7
      %p58 = por %p56, %p57
      %p60 = scmp.ne.s32.totalorder %s43, %s59
      %p61 = scmp.eq.s32.totalorder %s21, 0
      %p62 = por %p60, %p61
      %s63 = sadd.s32 %s23, 1
      %s64 = sadd.s32 %s30, 1
      %s65 = ssub.s32 %s22, %s34
      %s66 = ssub.s32 %s63, %s64
      %s67 = sor.u32 %s65, %s66
      %p68 = scmp.eq.s32.totalorder %s67, 0
      %s70 = sadd.s32 %s69, 1
      %s71 = scalar_select %p68, %s69, %s70
      %p74 = pneg %p68
      %p75 = scmp.eq.s32.totalorder %s15, 7
      %p76 = por %p74, %p75
      %p77 = scmp.ne.s32.totalorder %s69, %s72
      %p78 = scmp.eq.s32.totalorder %s15, 0
      %p79 = por %p77, %p78
      %p80 = scmp.ne.s32.totalorder %s69, %s72
      %p81 = scmp.eq.s32.totalorder %s20, 7
      %p82 = por %p80, %p81
      %p83 = scmp.ne.s32.totalorder %s72, %s73
      %p84 = scmp.eq.s32.totalorder %s20, 0
      %p85 = por %p83, %p84
      %p86 = scmp.ne.s32.totalorder %s72, %s73
      %p87 = scmp.eq.s32.totalorder %s21, 7
      %p88 = por %p86, %p87
      %p90 = scmp.ne.s32.totalorder %s73, %s89
      %p91 = scmp.eq.s32.totalorder %s21, 0
      %p92 = por %p90, %p91
      %s94 = sadd.s32 %s93, 1
      %p97 = scmp.eq.s32.totalorder %s15, 7
      %p98 = scmp.ne.s32.totalorder %s93, %s95
      %p99 = scmp.eq.s32.totalorder %s15, 0
      %p100 = por %p98, %p99
      %p101 = scmp.ne.s32.totalorder %s93, %s95
      %p102 = scmp.eq.s32.totalorder %s20, 7
      %p103 = por %p101, %p102
      %p104 = scmp.ne.s32.totalorder %s95, %s96
      %p105 = scmp.eq.s32.totalorder %s20, 0
      %p106 = por %p104, %p105
      %p107 = scmp.ne.s32.totalorder %s95, %s96
      %p108 = scmp.eq.s32.totalorder %s21, 7
      %p109 = por %p107, %p108
      %p111 = scmp.ne.s32.totalorder %s96, %s110
      %p112 = scmp.eq.s32.totalorder %s21, 0
      %p113 = por %p111, %p112
      %s115 = sadd.s32 %s114, 1
      %p118 = scmp.eq.s32.totalorder %s15, 7
      %p119 = scmp.ne.s32.totalorder %s114, %s116
      %p120 = scmp.eq.s32.totalorder %s15, 0
      %p121 = por %p119, %p120
      %p122 = scmp.ne.s32.totalorder %s114, %s116
      %p123 = scmp.eq.s32.totalorder %s20, 7
      %p124 = por %p122, %p123
      %p125 = scmp.ne.s32.totalorder %s116, %s117
      %p126 = scmp.eq.s32.totalorder %s20, 0
      %p127 = por %p125, %p126
      %p128 = scmp.ne.s32.totalorder %s116, %s117
      %p129 = scmp.eq.s32.totalorder %s21, 7
      %p130 = por %p128, %p129
      %p132 = scmp.ne.s32.totalorder %s117, %s131
      %p133 = scmp.eq.s32.totalorder %s21, 0
      %p134 = por %p132, %p133
      %s136 = sadd.s32 %s135, 1
      %p139 = scmp.eq.s32.totalorder %s15, 7
      %p140 = scmp.ne.s32.totalorder %s135, %s137
      %p141 = scmp.eq.s32.totalorder %s15, 0
      %p142 = por %p140, %p141
      %p143 = scmp.ne.s32.totalorder %s135, %s137
      %p144 = scmp.eq.s32.totalorder %s20, 7
      %p145 = por %p143, %p144
      %p146 = scmp.ne.s32.totalorder %s137, %s138
      %p147 = scmp.eq.s32.totalorder %s20, 0
      %p148 = por %p146, %p147
      %p149 = scmp.ne.s32.totalorder %s137, %s138
      %p150 = scmp.eq.s32.totalorder %s21, 7
      %p151 = por %p149, %p150
      %p153 = scmp.ne.s32.totalorder %s138, %s152
      %p154 = scmp.eq.s32.totalorder %s21, 0
      %p155 = por %p153, %p154
      %s157 = sadd.s32 %s156, 1
      %p160 = scmp.eq.s32.totalorder %s15, 7
      %p161 = scmp.ne.s32.totalorder %s156, %s158
      %p162 = scmp.eq.s32.totalorder %s15, 0
      %p163 = por %p161, %p162
      %p164 = scmp.ne.s32.totalorder %s156, %s158
      %p165 = scmp.eq.s32.totalorder %s20, 7
      %p166 = por %p164, %p165
      %p167 = scmp.ne.s32.totalorder %s158, %s159
      %p168 = scmp.eq.s32.totalorder %s20, 0
      %p169 = por %p167, %p168
      %p170 = scmp.ne.s32.totalorder %s158, %s159
      %p171 = scmp.eq.s32.totalorder %s21, 7
      %p172 = por %p170, %p171
      %p174 = scmp.ne.s32.totalorder %s159, %s173
      %p175 = scmp.eq.s32.totalorder %s21, 0
      %p176 = por %p174, %p175
      %s177 = ssub.s32 %s22, %s34
      %s178 = ssub.s32 %s23, %s30
      %s179 = sor.u32 %s177, %s178
      %p180 = scmp.eq.s32.totalorder %s179, 0
      %s182 = sadd.s32 %s181, 1
      %s183 = scalar_select %p180, %s181, %s182
      %p186 = pneg %p180
      %p187 = scmp.eq.s32.totalorder %s15, 7
      %p188 = por %p186, %p187
      %p189 = scmp.ne.s32.totalorder %s181, %s184
      %p190 = scmp.eq.s32.totalorder %s15, 0
      %p191 = por %p189, %p190
      %p192 = scmp.ne.s32.totalorder %s181, %s184
      %p193 = scmp.eq.s32.totalorder %s20, 7
      %p194 = por %p192, %p193
      %p195 = scmp.ne.s32.totalorder %s184, %s185
      %p196 = scmp.eq.s32.totalorder %s20, 0
      %p197 = por %p195, %p196
      %p198 = scmp.ne.s32.totalorder %s184, %s185
      %p199 = scmp.eq.s32.totalorder %s21, 7
      %p200 = por %p198, %p199
      %p202 = scmp.ne.s32.totalorder %s185, %s201
      %p203 = scmp.eq.s32.totalorder %s21, 0
      %p204 = por %p202, %p203
      %p205 = scmp.le.s32.totalorder 1, %s15
      %p206 = scmp.lt.s32.totalorder %s15, 9
      %p207 = pnand %p205, %p206
      %p208 = pneg %p207
      // Predicated region
      $region9: #{feature_encoder.2} parent=5 // pred_check
        _
      $region10: #{feature_encoder.2} parent=5 // pred_check_branch
        %210 = sbr.rel (%p207) target = $region12
      $region11: #{feature_encoder.2} parent=5 // pred_region
        %s211 = ssub.s32 %s15, 1
        // Predicated region
        $region13: #{feature_encoder.2} parent=11 // pred_check
          %p212 = pneg %p106
        $region14: #{feature_encoder.2} parent=11 // pred_check_branch
          %214 = sbr.rel (%p212) target = $region16
        $region15: #{feature_encoder.2} parent=11 // pred_region
          %s216 = ssub.s32 64, 64
          %217 = vsyncadd [#allocation3], %s216
          %s218 = sshll.u32 [#allocation2], 4
          %s219 = int_to_ptr.vmem [resolvable:$true] %s218
          %224 = dma.hbm_to_vmem [thread:$0]  %s2, 64, %s219, [#allocation3], 32, 32, 2
        $region16: #{feature_encoder.2} parent=11 // pred_fallthru
          _
        // Predicated region
        $region17: #{feature_encoder.2} parent=11 // pred_check
          %p225 = pneg %p127
        $region18: #{feature_encoder.2} parent=11 // pred_check_branch
          %227 = sbr.rel (%p225) target = $region20
        $region19: #{feature_encoder.2} parent=11 // pred_region
          %s229 = ssub.s32 16, 16
          %230 = vsyncadd [#allocation5], %s229
          %s232 = sshll.u32 [#allocation4], 4
          %s233 = int_to_ptr.vmem [resolvable:$true] %s232
          %235 = dma.hbm_to_vmem [thread:$0]  %s3, 16, %s233, [#allocation5]
        $region20: #{feature_encoder.2} parent=11 // pred_fallthru
          _
        // Predicated region
        $region21: #{feature_encoder.2} parent=11 // pred_check
          %p236 = pneg %p148
        $region22: #{feature_encoder.2} parent=11 // pred_check_branch
          %238 = sbr.rel (%p236) target = $region24
        $region23: #{feature_encoder.2} parent=11 // pred_region
          %s240 = ssub.s32 16, 16
          %241 = vsyncadd [#allocation5], %s240
          %s243 = sshll.u32 [#allocation6], 4
          %s244 = int_to_ptr.vmem [resolvable:$true] %s243
          %246 = dma.hbm_to_vmem [thread:$0]  %s4, 16, %s244, [#allocation5]
        $region24: #{feature_encoder.2} parent=11 // pred_fallthru
          _
        // Predicated region
        $region25: #{feature_encoder.2} parent=11 // pred_check
          %p247 = pneg %p169
        $region26: #{feature_encoder.2} parent=11 // pred_check_branch
          %249 = sbr.rel (%p247) target = $region28
        $region27: #{feature_encoder.2} parent=11 // pred_region
          %s251 = ssub.s32 16, 16
          %252 = vsyncadd [#allocation8], %s251
          %s254 = sshll.u32 [#allocation7], 4
          %s255 = int_to_ptr.vmem [resolvable:$true] %s254
          %257 = dma.hbm_to_vmem [thread:$0]  %s5, 16, %s255, [#allocation8]
        $region28: #{feature_encoder.2} parent=11 // pred_fallthru
          _
      $region12: #{feature_encoder.2} parent=5 // pred_fallthru
        _
      %p258 = scmp.lt.s32.totalorder %s15, 8
      // Predicated region
      $region29: #{feature_encoder.2} parent=5 // pred_check
        %p259 = pneg %p258
      $region30: #{feature_encoder.2} parent=5 // pred_check_branch
        %261 = sbr.rel (%p259) target = $region32
      $region31: #{feature_encoder.2} parent=5 // pred_region
        // Predicated region
        $region33: #{feature_encoder.2} parent=31 // pred_check
          %p262 = pneg %p49
        $region34: #{feature_encoder.2} parent=31 // pred_check_branch
          %264 = sbr.rel (%p262) target = $region36
        $region35: #{feature_encoder.2} parent=31 // pred_region
          %s265 = smul.u32 2, %s23
          %p266 = scmp.lt.s32.totalorder %s22, 1
          %s267 = scalar_select %p266, %s22, 1
          %p268 = scmp.lt.s32.totalorder %s265, 9
          %s269 = scalar_select %p268, %s265, 9
          %s270 = smul.addr %s267, 10
          %s271 = sadd.s32 %s269, %s270
          %s272 = smul.addr %s271, 4
          %s273 = scalar_lea.vmem %s0, %s272
          %s274 = smul.u32 2, %s23
        $region36: #{feature_encoder.2} parent=31 // pred_fallthru
          _
        // Predicated region
        $region37: #{feature_encoder.2} parent=31 // pred_check
          %p275 = pneg %p79
        $region38: #{feature_encoder.2} parent=31 // pred_check_branch
          %277 = sbr.rel (%p275) target = $region40
        $region39: #{feature_encoder.2} parent=31 // pred_region
          %s278 = sadd.s32 %s23, 1
          %s279 = smul.u32 2, %s278
          %p280 = scmp.lt.s32.totalorder %s22, 1
          %s281 = scalar_select %p280, %s22, 1
          %p282 = scmp.lt.s32.totalorder %s279, 9
          %s283 = scalar_select %p282, %s279, 9
          %s284 = smul.addr %s281, 10
          %s285 = sadd.s32 %s283, %s284
          %s286 = smul.addr %s285, 4
          %s287 = scalar_lea.vmem %s1, %s286
          %s288 = sadd.s32 %s23, 1
          %s289 = smul.u32 2, %s288
        $region40: #{feature_encoder.2} parent=31 // pred_fallthru
          _
      $region32: #{feature_encoder.2} parent=5 // pred_fallthru
        _
      %p290 = scmp.le.s32.totalorder 1, %s15
      %p291 = scmp.lt.s32.totalorder %s15, 9
      %p292 = pnand %p290, %p291
      %p293 = pneg %p292
      // Predicated region
      $region41: #{feature_encoder.2} parent=5 // pred_check
        _
      $region42: #{feature_encoder.2} parent=5 // pred_check_branch
        %295 = sbr.rel (%p292) target = $region44
      $region43: #{feature_encoder.2} parent=5 // pred_region
        %s296 = ssub.s32 %s15, 1
        // Predicated region
        $region45: #{feature_encoder.2} parent=43 // pred_check
          %p297 = pneg %p106
        $region46: #{feature_encoder.2} parent=43 // pred_check_branch
          %299 = sbr.rel (%p297) target = $region48
        $region47: #{feature_encoder.2} parent=43 // pred_region
          %300 = dma.done [#allocation3], 64
        $region48: #{feature_encoder.2} parent=43 // pred_fallthru
          _
        // Predicated region
        $region49: #{feature_encoder.2} parent=43 // pred_check
          %p301 = pneg %p127
        $region50: #{feature_encoder.2} parent=43 // pred_check_branch
          %303 = sbr.rel (%p301) target = $region52
        $region51: #{feature_encoder.2} parent=43 // pred_region
          %304 = dma.done [#allocation5], 16
        $region52: #{feature_encoder.2} parent=43 // pred_fallthru
          _
        // Predicated region
        $region53: #{feature_encoder.2} parent=43 // pred_check
          %p305 = pneg %p148
        $region54: #{feature_encoder.2} parent=43 // pred_check_branch
          %307 = sbr.rel (%p305) target = $region56
        $region55: #{feature_encoder.2} parent=43 // pred_region
          %308 = dma.done [#allocation5], 16
        $region56: #{feature_encoder.2} parent=43 // pred_fallthru
          _
        // Predicated region
        $region57: #{feature_encoder.2} parent=43 // pred_check
          %p309 = pneg %p169
        $region58: #{feature_encoder.2} parent=43 // pred_check_branch
          %311 = sbr.rel (%p309) target = $region60
        $region59: #{feature_encoder.2} parent=43 // pred_region
          %312 = dma.done [#allocation8], 16
        $region60: #{feature_encoder.2} parent=43 // pred_fallthru
          _
        %s313 = smul.u32 2, %s25
        %p314 = scmp.lt.s32.totalorder %s24, 1
        %s315 = scalar_select %p314, %s24, 1
        %p316 = scmp.lt.s32.totalorder %s313, 9
        %s317 = scalar_select %p316, %s313, 9
        %s318 = smul.addr %s315, 10
        %s319 = sadd.s32 %s317, %s318
        %s320 = smul.addr %s319, 4
        %s321 = scalar_lea.vmem %s0, %s320
        %p322 = pneg %p55
        %p323 = pneg %p52
        %s324 = sadd.s32 %s25, 1
        %s325 = smul.u32 2, %s324
        %p326 = scmp.lt.s32.totalorder %s24, 1
        %s327 = scalar_select %p326, %s24, 1
        %p328 = scmp.lt.s32.totalorder %s325, 9
        %s329 = scalar_select %p328, %s325, 9
        %s330 = smul.addr %s327, 10
        %s331 = sadd.s32 %s329, %s330
        %s332 = smul.addr %s331, 4
        %s333 = scalar_lea.vmem %s1, %s332
        %p334 = pneg %p85
        %p335 = pneg %p82
        %p336 = pneg %p106
        %p337 = pneg %p103
        %p338 = pneg %p127
        %p339 = pneg %p124
        %p340 = pneg %p148
        %p341 = pneg %p145
        %p342 = pneg %p169
        %p343 = pneg %p166
        %p344 = pneg %p197
        %p345 = pneg %p194
        %s346 = smul.u32 2, %s25
        %p347 = scmp.lt.s32.totalorder %s24, 1
        %s348 = scalar_select %p347, %s24, 1
        %p349 = scmp.lt.s32.totalorder %s346, 7
        %s350 = scalar_select %p349, %s346, 7
        %s351 = smul.addr %s348, 8
        %s352 = sadd.s32 %s350, %s351
        %s353 = smul.addr %s352, 4
        %s354 = scalar_lea.vmem %s6, %s353
        %s355 = smul.u32 2, %s25
        %p356 = scmp.lt.s32.totalorder %s24, 1
        %s357 = scalar_select %p356, %s24, 1
        %p358 = scmp.lt.s32.totalorder %s355, 9
        %s359 = scalar_select %p358, %s355, 9
        %s360 = smul.addr %s357, 10
        %s361 = sadd.s32 %s359, %s360
        %s362 = smul.addr %s361, 4
        %s363 = scalar_lea.vmem %s0, %s362
        %s364 = smul.u32 2, %s25
        %s365 = sadd.s32 %s25, 1
        %s366 = smul.u32 2, %s365
        %p367 = scmp.lt.s32.totalorder %s24, 1
        %s368 = scalar_select %p367, %s24, 1
        %p369 = scmp.lt.s32.totalorder %s366, 9
        %s370 = scalar_select %p369, %s366, 9
        %s371 = smul.addr %s368, 10
        %s372 = sadd.s32 %s370, %s371
        %s373 = smul.addr %s372, 4
        %s374 = scalar_lea.vmem %s1, %s373
        %s375 = sadd.s32 %s25, 1
        %s376 = smul.u32 2, %s375
        %s377 = smul.u32 2, %s25
        %p378 = scmp.lt.s32.totalorder %s24, 1
        %s379 = scalar_select %p378, %s24, 1
        %p380 = scmp.lt.s32.totalorder %s377, 7
        %s381 = scalar_select %p380, %s377, 7
        %s382 = smul.addr %s379, 8
        %s383 = sadd.s32 %s381, %s382
        %s384 = smul.addr %s383, 4
        %s385 = scalar_lea.vmem %s6, %s384
        %s386 = smul.u32 2, %s25
        %v388 = vld [vmem:[%s363] sm:$0xf]
        %v389 = vld [vmem:[%s363 + $0x4] sm:$0xf]
        %v390 = vld [vmem:[#allocation2] sm:$0x3]
        %v391 = vld [vmem:[%s374] sm:$0xf]
        %v392 = vld [vmem:[%s374 + $0x4] sm:$0xf]
        %v393 = vlaneseq
        %v394 = vshrl.u32 %v393, 7
        %v395 = vadd.s32 %v394, 8
        %s396 = scalar_lea.vmem [#allocation2], 2
        %v397 = vld [vmem:[%s396] sm:$0x3]
        %v400 = vunpack.c.l.b16 %v388
        %v401 = vunpack.c.l.b16 %v389
        %v402 = vpack.c.b16 %v401, %v400
        %vm403 = vcmask 31744
        %v405 = vsel %vm403, %v402, 0
        %vm407 = vcmask 1041408
        %v409 = vsel %vm407, %v397, 0
        %411 = vmatprep.subr.bf16.mxu0 0
        %412 = vmatpush1.bf16.msra.mxu0 %v409
        %413 = vmatprep.subr.bf16.mxu0 0
        %414 = vmatpush1.bf16.msra.mxu0 0
        %415 = vmatprep.subr.bf16.mxu0 0
        %416 = vmatpush1.bf16.msra.mxu0 0
        %417 = vmatprep.subr.bf16.mxu0 0
        %418 = vmatpush1.bf16.msra.mxu0 0
        %419 = vmatprep.subr.bf16.mxu0 0
        %420 = vmatpush1.bf16.msra.mxu0 0
        %421 = vmatprep.subr.bf16.mxu0 0
        %422 = vmatpush1.bf16.msra.mxu0 0
        %423 = vmatprep.subr.bf16.mxu0 0
        %424 = vmatpush1.bf16.msra.mxu0 0
        %425 = vmatprep.subr.bf16.mxu0 0
        %426 = vmatpush1.bf16.msra.mxu0 0
        %427 = vmatprep.subr.bf16.mxu0 0
        %428 = vmatpush1.bf16.msra.mxu0 0
        %429 = vmatprep.subr.bf16.mxu0 0
        %430 = vmatpush1.bf16.msra.mxu0 0
        %431 = vmatprep.subr.bf16.mxu0 0
        %432 = vmatpush1.bf16.msra.mxu0 0
        %433 = vmatprep.subr.bf16.mxu0 0
        %434 = vmatpush1.bf16.msra.mxu0 0
        %435 = vmatprep.subr.bf16.mxu0 0
        %436 = vmatpush1.bf16.msra.mxu0 0
        %437 = vmatprep.subr.bf16.mxu0 0
        %438 = vmatpush1.bf16.msra.mxu0 0
        %439 = vmatprep.subr.bf16.mxu0 0
        %440 = vmatpush1.bf16.msra.mxu0 0
        %441 = vmatprep.subr.bf16.mxu0 0
        %442 = vmatpush1.bf16.msra.mxu0 0
        %443 = vmatprep.mubr.bf16.mxu0 0
        %444 = vmatmul.mubr.bf16.gmra.mrb[0].mxu0 %v405
        %v445 = vpop.f32.mrb[0].mxu0
        %v446 = vadd.f32 0.0, %v445
        %v447 = vpop.f32.mrb[0].mxu0
        %v448 = vpop.f32.mrb[0].mxu0
        %v449 = vadd.f32 0.0, %v448
        %v450 = vpop.f32.mrb[0].mxu0
        %451 = vdwg.mxu0
        %v452 = vrot.slane %v446, 1
        %v453 = vrot.slane %v449, 1
        %vm454 = vcmp.lt.s32.totalorder %v394, 7
        %v455 = vsel %vm454, %v452, %v453
        %v456 = vsel %vm454, %v453, %v452
        %v459 = vunpack.c.l.b16 %v391
        %v460 = vunpack.c.l.b16 %v392
        %v461 = vpack.c.b16 %v460, %v459
        %v463 = vsel %vm403, %v461, 0
        %465 = vmatprep.subr.bf16.mxu0 0
        %466 = vmatpush1.bf16.msra.mxu0 %v409
        %467 = vmatprep.subr.bf16.mxu0 0
        %468 = vmatpush1.bf16.msra.mxu0 0
        %469 = vmatprep.subr.bf16.mxu0 0
        %470 = vmatpush1.bf16.msra.mxu0 0
        %471 = vmatprep.subr.bf16.mxu0 0
        %472 = vmatpush1.bf16.msra.mxu0 0
        %473 = vmatprep.subr.bf16.mxu0 0
        %474 = vmatpush1.bf16.msra.mxu0 0
        %475 = vmatprep.subr.bf16.mxu0 0
        %476 = vmatpush1.bf16.msra.mxu0 0
        %477 = vmatprep.subr.bf16.mxu0 0
        %478 = vmatpush1.bf16.msra.mxu0 0
        %479 = vmatprep.subr.bf16.mxu0 0
        %480 = vmatpush1.bf16.msra.mxu0 0
        %481 = vmatprep.subr.bf16.mxu0 0
        %482 = vmatpush1.bf16.msra.mxu0 0
        %483 = vmatprep.subr.bf16.mxu0 0
        %484 = vmatpush1.bf16.msra.mxu0 0
        %485 = vmatprep.subr.bf16.mxu0 0
        %486 = vmatpush1.bf16.msra.mxu0 0
        %487 = vmatprep.subr.bf16.mxu0 0
        %488 = vmatpush1.bf16.msra.mxu0 0
        %489 = vmatprep.subr.bf16.mxu0 0
        %490 = vmatpush1.bf16.msra.mxu0 0
        %491 = vmatprep.subr.bf16.mxu0 0
        %492 = vmatpush1.bf16.msra.mxu0 0
        %493 = vmatprep.subr.bf16.mxu0 0
        %494 = vmatpush1.bf16.msra.mxu0 0
        %495 = vmatprep.subr.bf16.mxu0 0
        %496 = vmatpush1.bf16.msra.mxu0 0
        %497 = vmatprep.mubr.bf16.mxu0 0
        %498 = vmatmul.mubr.bf16.gmra.mrb[0].mxu0 %v463
        %v499 = vpop.f32.mrb[0].mxu0
        %v500 = vadd.f32 0.0, %v499
        %v501 = vpop.f32.mrb[0].mxu0
        %v502 = vpop.f32.mrb[0].mxu0
        %v503 = vpop.f32.mrb[0].mxu0
        %504 = vdwg.mxu0
        %vm505 = vcmp.lt.s32.totalorder %v394, 15
        %vm506 = vcmp.lt.s32.totalorder %v395, 15
        %v507 = vsel %vm505, 1, 0
        %v508 = vsel %vm506, 1, 0
        %vm509 = vcmp.eq.s32.totalorder %v507, 1
        %vm510 = vcmp.eq.s32.totalorder %v508, 1
        %v511 = vlaneseq
        %v512 = vshrl.u32 %v511, 7
        %v513 = vsub.s32 0, %v512
        %v514 = vrot.slane %v500, %v513
        %v515 = vsel %vm509, %v455, %v514
        %v516 = vsel %vm510, %v456, %v514
        %v518 = vsel %vm407, %v390, 0
        %520 = vmatprep.subr.bf16.mxu0 0
        %521 = vmatpush1.bf16.msra.mxu0 %v518
        %522 = vmatprep.subr.bf16.mxu0 0
        %523 = vmatpush1.bf16.msra.mxu0 0
        %524 = vmatprep.subr.bf16.mxu0 0
        %525 = vmatpush1.bf16.msra.mxu0 0
        %526 = vmatprep.subr.bf16.mxu0 0
        %527 = vmatpush1.bf16.msra.mxu0 0
        %528 = vmatprep.subr.bf16.mxu0 0
        %529 = vmatpush1.bf16.msra.mxu0 0
        %530 = vmatprep.subr.bf16.mxu0 0
        %531 = vmatpush1.bf16.msra.mxu0 0
        %532 = vmatprep.subr.bf16.mxu0 0
        %533 = vmatpush1.bf16.msra.mxu0 0
        %534 = vmatprep.subr.bf16.mxu0 0
        %535 = vmatpush1.bf16.msra.mxu0 0
        %536 = vmatprep.subr.bf16.mxu0 0
        %537 = vmatpush1.bf16.msra.mxu0 0
        %538 = vmatprep.subr.bf16.mxu0 0
        %539 = vmatpush1.bf16.msra.mxu0 0
        %540 = vmatprep.subr.bf16.mxu0 0
        %541 = vmatpush1.bf16.msra.mxu0 0
        %542 = vmatprep.subr.bf16.mxu0 0
        %543 = vmatpush1.bf16.msra.mxu0 0
        %544 = vmatprep.subr.bf16.mxu0 0
        %545 = vmatpush1.bf16.msra.mxu0 0
        %546 = vmatprep.subr.bf16.mxu0 0
        %547 = vmatpush1.bf16.msra.mxu0 0
        %548 = vmatprep.subr.bf16.mxu0 0
        %549 = vmatpush1.bf16.msra.mxu0 0
        %550 = vmatprep.subr.bf16.mxu0 0
        %551 = vmatpush1.bf16.msra.mxu0 0
        %552 = vmatprep.mubr.bf16.mxu0 0
        %553 = vmatmul.mubr.bf16.gmra.mrb[0].mxu0 %v405
        %v554 = vpop.f32.mrb[0].mxu0
        %v555 = vadd.f32 %v515, %v554
        %v556 = vpop.f32.mrb[0].mxu0
        %v557 = vpop.f32.mrb[0].mxu0
        %v558 = vadd.f32 %v516, %v557
        %v559 = vpop.f32.mrb[0].mxu0
        %560 = vdwg.mxu0
        %v561 = vld [vmem:[#allocation4] sm:$0x1]
        %v563 = vlaneseq
        %v564 = vshrl.u32 %v563, 7
        %v565 = vsub.s32 0, %v564
        %v566 = vrot.slane %v561, %v565
        %v568 = vadd.f32 %v555, %v566
        %v569 = vadd.f32 %v558, %v566
        %570 = vadd.xlane.f32.xlu0 %v568
        %v571 = vpop.xlane.xlu0 %570
        %572 = vadd.xlane.f32.xlu0 %v569
        %v573 = vpop.xlane.xlu0 %572
        %v574 = vmul.f32 %v571, 0.03125
        %v575 = vmul.f32 %v573, 0.03125
        %v576 = vsub.f32 %v568, %v574
        %v577 = vsub.f32 %v569, %v575
        %v578 = vlaneseq
        %v579 = vand.u32 %v578, 127
        %vm580 = vcmp.lt.s32.totalorder %v579, 32
        %v581 = vsel %vm580, 1, 0
        %vm582 = vcmp.eq.s32.totalorder %v581, 1
        %v583 = vsel %vm582, %v576, 0.0
        %v584 = vsel %vm582, %v577, 0.0
        %v585 = vmul.f32 %v583, %v583
        %v586 = vmul.f32 %v584, %v584
        %587 = vadd.xlane.f32.xlu0 %v585
        %v588 = vpop.xlane.xlu0 %587
        %589 = vadd.xlane.f32.xlu0 %v586
        %v590 = vpop.xlane.xlu0 %589
        %v591 = vmul.f32 %v588, 0.03125
        %v592 = vmul.f32 %v590, 0.03125
        %v593 = vadd.f32 %v591, 1e-05
        %v594 = vadd.f32 %v592, 1e-05
        %v595 = vrsqrt.pop %v593
        %v596 = vrsqrt.pop %v594
        %v597 = vmul.f32 %v583, %v595
        %v598 = vmul.f32 %v584, %v596
        %v599 = vld [vmem:[#allocation6] sm:$0x1]
        %v601 = vlaneseq
        %v602 = vshrl.u32 %v601, 7
        %v603 = vsub.s32 0, %v602
        %v604 = vrot.slane %v599, %v603
        %v606 = vmul.f32 %v597, %v604
        %v607 = vmul.f32 %v598, %v604
        %v608 = vld [vmem:[#allocation7] sm:$0x1]
        %v610 = vlaneseq
        %v611 = vshrl.u32 %v610, 7
        %v612 = vsub.s32 0, %v611
        %v613 = vrot.slane %v608, %v612
        %v615 = vadd.f32 %v606, %v613
        %v616 = vadd.f32 %v607, %v613
        %v617 = vmul.f32 %v615, 0.5
        %v618 = vmul.f32 %v616, 0.5
        %v619 = vmul.f32 %v615, 0.70710677
        %v620 = vmul.f32 %v616, 0.70710677
        %v621 = verf.f32.pop %v619
        %v622 = verf.f32.pop %v620
        %v623 = vadd.f32 %v621, 1.0
        %v624 = vadd.f32 %v622, 1.0
        %v625 = vmul.f32 %v617, %v623
        %v626 = vmul.f32 %v618, %v624
        %v627 = vpack.c.bf16 %v626, %v625
        %v629 = vunpack.c.l.b16 %v627
        %v630 = vunpack.c.h.b16 %v627
        %v631 = vpack.c.b16 %v629, %v629
        %v632 = vpack.c.b16 %v630, %v630
        %635 = vst [vmem:[%s385] sm:$0xf] %v631
        %636 = vst [vmem:[%s385 + $0x4] sm:$0xf] %v632
        %s637 = smul.u32 2, %s25
        %p638 = scmp.lt.s32.totalorder %s24, 1
        %s639 = scalar_select %p638, %s24, 1
        %p640 = scmp.lt.s32.totalorder %s637, 7
        %s641 = scalar_select %p640, %s637, 7
        %s642 = smul.addr %s639, 8
        %s643 = sadd.s32 %s641, %s642
        %s644 = smul.addr %s643, 4
        %s645 = scalar_lea.vmem %s6, %s644
        // Predicated region
        $region61: #{feature_encoder.2} parent=43 // pred_check
          %p646 = pneg %p194
        $region62: #{feature_encoder.2} parent=43 // pred_check_branch
          %648 = sbr.rel (%p646) target = $region64
        $region63: #{feature_encoder.2} parent=43 // pred_region
          %s649 = smul.u32 2, %s25
        $region64: #{feature_encoder.2} parent=43 // pred_fallthru
          _
      $region44: #{feature_encoder.2} parent=5 // pred_fallthru
        _
      %p650 = scmp.le.s32.totalorder 2, %s15
      // Predicated region
      $region65: #{feature_encoder.2} parent=5 // pred_check
        %p651 = pneg %p650
      $region66: #{feature_encoder.2} parent=5 // pred_check_branch
        %653 = sbr.rel (%p651) target = $region68
      $region67: #{feature_encoder.2} parent=5 // pred_region
        %s654 = ssub.s32 %s15, 2
        // Predicated region
        $region69: #{feature_encoder.2} parent=67 // pred_check
          %p655 = pneg %p200
        $region70: #{feature_encoder.2} parent=67 // pred_check_branch
          %657 = sbr.rel (%p655) target = $region72
        $region71: #{feature_encoder.2} parent=67 // pred_region
          %s658 = smul.u32 2, %s27
          %p659 = scmp.lt.s32.totalorder %s26, 1
          %s660 = scalar_select %p659, %s26, 1
          %p661 = scmp.lt.s32.totalorder %s658, 7
          %s662 = scalar_select %p661, %s658, 7
          %s663 = smul.addr %s660, 8
          %s664 = sadd.s32 %s662, %s663
          %s665 = smul.addr %s664, 4
          %s666 = scalar_lea.vmem %s6, %s665
        $region72: #{feature_encoder.2} parent=67 // pred_fallthru
          _
      $region68: #{feature_encoder.2} parent=5 // pred_fallthru
        _
    $region6: #{feature_encoder.2} parent=1 // loop_footer
      %s19 = sadd.s32 1, %s15
    $region7: #{feature_encoder.2} parent=1 // loop_footer_branch
      %14 = sbr.rel target = $region3
    $region8: #{feature_encoder.2} parent=1 // loop_exit
      _
    %667 = vsyncpa [#allocation3], 1
    %s668 = scalar_lea.sflag [#allocation3], 1
    %669 = vsyncpa %s668, 1
    %670 = vsyncpa [#allocation5], 1
    %671 = vsyncpa [#allocation8], 1

// kernel: feature_encoder.3
$region0: #{feature_encoder.3}
  #allocation0 [shape = 'u32[]', space=smem, size = 0x4, offset = 0x4, fixed_abs, tag = 'smem constant byte address 0x4 - core index']
  #allocation1 [shape = 'u32[144,128]{1,0:T(1,128)}', space=vmem, size = 0x12000, scoped, tag = 'internal scratch']
  %s0 = inlined_call_operand.vmem [shape: bf16[2,32,256], index: 0, kind: input, shape index: {}, may-alias: {0,1}]
  %s1 = inlined_call_operand.vmem [shape: bf16[2,32,256], index: 1, kind: input, shape index: {}, may-alias: {0,1}]
  %s2 = inlined_call_operand.vmem [shape: bf16[2,256,128], index: 2, kind: input, shape index: {}]
  %s3 = inlined_call_operand.vmem [shape: f32[1,128], index: 3, kind: input, shape index: {}]
  %s4 = inlined_call_operand.vmem [shape: f32[1,128], index: 4, kind: input, shape index: {}]
  %s5 = inlined_call_operand.vmem [shape: f32[1,128], index: 5, kind: input, shape index: {}]
  %s6 = inlined_call_operand.vmem [shape: f32[2,6,128], index: 6, kind: output, shape index: {}]
  %s7 = sld [smem:[#allocation0]]
  $region91: #{feature_encoder.3} parent=0
    _
  %s9 = ssub.s32 1, %s7
  %s10 = scalar_select 0, %s9, %s7
  $region1: #{feature_encoder.3} parent=0
    #allocation2 [shape = 'u8[16384]{0}', space=vmem, size = 0x4000, scoped, tag = 'output window, operand 0']
    loop: start=0, step=1, limit=4
    $region2: #{feature_encoder.3} parent=1 // loop_pre_header
      _
    $region3: #{feature_encoder.3} parent=1 // loop_header
      %s12 = sphi 0, %s16
      %p13 = scmp.ge.s32.totalorder %s12, 4
      %s19 = sphi 0, %s31
      %s20 = sphi 0, %s27
      %s21 = sphi 0, %s19
      %s22 = sphi 0, %s20
      %s23 = sphi 0, %s21
      %s24 = sphi 0, %s22
      %s36 = sphi 0, %s38
      %s39 = sphi 0, %s36
      %s40 = sphi 0, %s39
      %s56 = sphi 0, %s40
      %s66 = sphi 0, %s68
      %s69 = sphi 0, %s66
      %s70 = sphi 0, %s69
      %s86 = sphi 0, %s70
      %s90 = sphi 0, %s90
      %s92 = sphi 0, %s90
      %s93 = sphi 0, %s92
      %s107 = sphi 0, %s93
      %s111 = sphi 0, %s111
      %s113 = sphi 0, %s111
      %s114 = sphi 0, %s113
      %s128 = sphi 0, %s114
      %s132 = sphi 0, %s132
      %s134 = sphi 0, %s132
      %s135 = sphi 0, %s134
      %s149 = sphi 0, %s135
      %s153 = sphi 0, %s153
      %s155 = sphi 0, %s153
      %s156 = sphi 0, %s155
      %s170 = sphi 0, %s156
      %s178 = sphi 0, %s180
      %s181 = sphi 0, %s178
      %s182 = sphi 0, %s181
      %s198 = sphi 0, %s182
    $region4: #{feature_encoder.3} parent=1 // loop_header_branch
      %15 = sbr.rel (%p13) target = $region8
    $region5: #{feature_encoder.3} parent=1 // loop_body
      %s17 = ssub.s32 %s12, 1
      %s18 = ssub.s32 %s12, 2
      %s25 = sadd.s32 1, %s20
      %p26 = scmp.ge.s32.totalorder %s25, 1
      %s27 = scalar_select %p26, 0, %s25
      %s28 = sadd.s32 1, %s19
      %s29 = scalar_select %p26, %s28, %s19
      %p30 = scmp.ge.s32.totalorder %s29, 2
      %s31 = scalar_select %p30, 0, %s29
      %s32 = ssub.s32 %s19, %s31
      %s33 = ssub.s32 %s20, %s27
      %s34 = sor.u32 %s32, %s33
      %p35 = scmp.eq.s32.totalorder %s34, 0
      %s37 = sadd.s32 %s36, 1
      %s38 = scalar_select %p35, %s36, %s37
      %p41 = pneg %p35
      %p42 = scmp.eq.s32.totalorder %s12, 1
      %p43 = por %p41, %p42
      %p44 = scmp.ne.s32.totalorder %s36, %s39
      %p45 = scmp.eq.s32.totalorder %s12, 0
      %p46 = por %p44, %p45
      %p47 = scmp.ne.s32.totalorder %s36, %s39
      %p48 = scmp.eq.s32.totalorder %s17, 1
      %p49 = por %p47, %p48
      %p50 = scmp.ne.s32.totalorder %s39, %s40
      %p51 = scmp.eq.s32.totalorder %s17, 0
      %p52 = por %p50, %p51
      %p53 = scmp.ne.s32.totalorder %s39, %s40
      %p54 = scmp.eq.s32.totalorder %s18, 1
      %p55 = por %p53, %p54
      %p57 = scmp.ne.s32.totalorder %s40, %s56
      %p58 = scmp.eq.s32.totalorder %s18, 0
      %p59 = por %p57, %p58
      %s60 = sadd.s32 %s20, 1
      %s61 = sadd.s32 %s27, 1
      %s62 = ssub.s32 %s19, %s31
      %s63 = ssub.s32 %s60, %s61
      %s64 = sor.u32 %s62, %s63
      %p65 = scmp.eq.s32.totalorder %s64, 0
      %s67 = sadd.s32 %s66, 1
      %s68 = scalar_select %p65, %s66, %s67
      %p71 = pneg %p65
      %p72 = scmp.eq.s32.totalorder %s12, 1
      %p73 = por %p71, %p72
      %p74 = scmp.ne.s32.totalorder %s66, %s69
      %p75 = scmp.eq.s32.totalorder %s12, 0
      %p76 = por %p74, %p75
      %p77 = scmp.ne.s32.totalorder %s66, %s69
      %p78 = scmp.eq.s32.totalorder %s17, 1
      %p79 = por %p77, %p78
      %p80 = scmp.ne.s32.totalorder %s69, %s70
      %p81 = scmp.eq.s32.totalorder %s17, 0
      %p82 = por %p80, %p81
      %p83 = scmp.ne.s32.totalorder %s69, %s70
      %p84 = scmp.eq.s32.totalorder %s18, 1
      %p85 = por %p83, %p84
      %p87 = scmp.ne.s32.totalorder %s70, %s86
      %p88 = scmp.eq.s32.totalorder %s18, 0
      %p89 = por %p87, %p88
      %s91 = sadd.s32 %s90, 1
      %p94 = scmp.eq.s32.totalorder %s12, 1
      %p95 = scmp.ne.s32.totalorder %s90, %s92
      %p96 = scmp.eq.s32.totalorder %s12, 0
      %p97 = por %p95, %p96
      %p98 = scmp.ne.s32.totalorder %s90, %s92
      %p99 = scmp.eq.s32.totalorder %s17, 1
      %p100 = por %p98, %p99
      %p101 = scmp.ne.s32.totalorder %s92, %s93
      %p102 = scmp.eq.s32.totalorder %s17, 0
      %p103 = por %p101, %p102
      %p104 = scmp.ne.s32.totalorder %s92, %s93
      %p105 = scmp.eq.s32.totalorder %s18, 1
      %p106 = por %p104, %p105
      %p108 = scmp.ne.s32.totalorder %s93, %s107
      %p109 = scmp.eq.s32.totalorder %s18, 0
      %p110 = por %p108, %p109
      %s112 = sadd.s32 %s111, 1
      %p115 = scmp.eq.s32.totalorder %s12, 1
      %p116 = scmp.ne.s32.totalorder %s111, %s113
      %p117 = scmp.eq.s32.totalorder %s12, 0
      %p118 = por %p116, %p117
      %p119 = scmp.ne.s32.totalorder %s111, %s113
      %p120 = scmp.eq.s32.totalorder %s17, 1
      %p121 = por %p119, %p120
      %p122 = scmp.ne.s32.totalorder %s113, %s114
      %p123 = scmp.eq.s32.totalorder %s17, 0
      %p124 = por %p122, %p123
      %p125 = scmp.ne.s32.totalorder %s113, %s114
      %p126 = scmp.eq.s32.totalorder %s18, 1
      %p127 = por %p125, %p126
      %p129 = scmp.ne.s32.totalorder %s114, %s128
      %p130 = scmp.eq.s32.totalorder %s18, 0
      %p131 = por %p129, %p130
      %s133 = sadd.s32 %s132, 1
      %p136 = scmp.eq.s32.totalorder %s12, 1
      %p137 = scmp.ne.s32.totalorder %s132, %s134
      %p138 = scmp.eq.s32.totalorder %s12, 0
      %p139 = por %p137, %p138
      %p140 = scmp.ne.s32.totalorder %s132, %s134
      %p141 = scmp.eq.s32.totalorder %s17, 1
      %p142 = por %p140, %p141
      %p143 = scmp.ne.s32.totalorder %s134, %s135
      %p144 = scmp.eq.s32.totalorder %s17, 0
      %p145 = por %p143, %p144
      %p146 = scmp.ne.s32.totalorder %s134, %s135
      %p147 = scmp.eq.s32.totalorder %s18, 1
      %p148 = por %p146, %p147
      %p150 = scmp.ne.s32.totalorder %s135, %s149
      %p151 = scmp.eq.s32.totalorder %s18, 0
      %p152 = por %p150, %p151
      %s154 = sadd.s32 %s153, 1
      %p157 = scmp.eq.s32.totalorder %s12, 1
      %p158 = scmp.ne.s32.totalorder %s153, %s155
      %p159 = scmp.eq.s32.totalorder %s12, 0
      %p160 = por %p158, %p159
      %p161 = scmp.ne.s32.totalorder %s153, %s155
      %p162 = scmp.eq.s32.totalorder %s17, 1
      %p163 = por %p161, %p162
      %p164 = scmp.ne.s32.totalorder %s155, %s156
      %p165 = scmp.eq.s32.totalorder %s17, 0
      %p166 = por %p164, %p165
      %p167 = scmp.ne.s32.totalorder %s155, %s156
      %p168 = scmp.eq.s32.totalorder %s18, 1
      %p169 = por %p167, %p168
      %p171 = scmp.ne.s32.totalorder %s156, %s170
      %p172 = scmp.eq.s32.totalorder %s18, 0
      %p173 = por %p171, %p172
      %s174 = ssub.s32 %s19, %s31
      %s175 = ssub.s32 %s20, %s27
      %s176 = sor.u32 %s174, %s175
      %p177 = scmp.eq.s32.totalorder %s176, 0
      %s179 = sadd.s32 %s178, 1
      %s180 = scalar_select %p177, %s178, %s179
      %p183 = pneg %p177
      %p184 = scmp.eq.s32.totalorder %s12, 1
      %p185 = por %p183, %p184
      %p186 = scmp.ne.s32.totalorder %s178, %s181
      %p187 = scmp.eq.s32.totalorder %s12, 0
      %p188 = por %p186, %p187
      %p189 = scmp.ne.s32.totalorder %s178, %s181
      %p190 = scmp.eq.s32.totalorder %s17, 1
      %p191 = por %p189, %p190
      %p192 = scmp.ne.s32.totalorder %s181, %s182
      %p193 = scmp.eq.s32.totalorder %s17, 0
      %p194 = por %p192, %p193
      %p195 = scmp.ne.s32.totalorder %s181, %s182
      %p196 = scmp.eq.s32.totalorder %s18, 1
      %p197 = por %p195, %p196
      %p199 = scmp.ne.s32.totalorder %s182, %s198
      %p200 = scmp.eq.s32.totalorder %s18, 0
      %p201 = por %p199, %p200
      %p202 = scmp.le.s32.totalorder 1, %s12
      %p203 = scmp.lt.s32.totalorder %s12, 3
      %p204 = pnand %p202, %p203
      %p205 = pneg %p204
      // Predicated region
      $region9: #{feature_encoder.3} parent=5 // pred_check
        _
      $region10: #{feature_encoder.3} parent=5 // pred_check_branch
        %207 = sbr.rel (%p204) target = $region12
      $region11: #{feature_encoder.3} parent=5 // pred_region
        %s208 = ssub.s32 %s12, 1
        // Predicated region
        $region13: #{feature_encoder.3} parent=11 // pred_check
          %p209 = pneg %p103
        $region14: #{feature_encoder.3} parent=11 // pred_check_branch
          %211 = sbr.rel (%p209) target = $region16
        $region15: #{feature_encoder.3} parent=11 // pred_region
          _
        $region16: #{feature_encoder.3} parent=11 // pred_fallthru
          _
        // Predicated region
        $region17: #{feature_encoder.3} parent=11 // pred_check
          %p212 = pneg %p124
        $region18: #{feature_encoder.3} parent=11 // pred_check_branch
          %214 = sbr.rel (%p212) target = $region20
        $region19: #{feature_encoder.3} parent=11 // pred_region
          _
        $region20: #{feature_encoder.3} parent=11 // pred_fallthru
          _
        // Predicated region
        $region21: #{feature_encoder.3} parent=11 // pred_check
          %p215 = pneg %p145
        $region22: #{feature_encoder.3} parent=11 // pred_check_branch
          %217 = sbr.rel (%p215) target = $region24
        $region23: #{feature_encoder.3} parent=11 // pred_region
          _
        $region24: #{feature_encoder.3} parent=11 // pred_fallthru
          _
        // Predicated region
        $region25: #{feature_encoder.3} parent=11 // pred_check
          %p218 = pneg %p166
        $region26: #{feature_encoder.3} parent=11 // pred_check_branch
          %220 = sbr.rel (%p218) target = $region28
        $region27: #{feature_encoder.3} parent=11 // pred_region
          _
        $region28: #{feature_encoder.3} parent=11 // pred_fallthru
          _
      $region12: #{feature_encoder.3} parent=5 // pred_fallthru
        _
      %p221 = scmp.lt.s32.totalorder %s12, 2
      // Predicated region
      $region29: #{feature_encoder.3} parent=5 // pred_check
        %p222 = pneg %p221
      $region30: #{feature_encoder.3} parent=5 // pred_check_branch
        %224 = sbr.rel (%p222) target = $region32
      $region31: #{feature_encoder.3} parent=5 // pred_region
        // Predicated region
        $region33: #{feature_encoder.3} parent=31 // pred_check
          %p225 = pneg %p46
        $region34: #{feature_encoder.3} parent=31 // pred_check_branch
          %227 = sbr.rel (%p225) target = $region36
        $region35: #{feature_encoder.3} parent=31 // pred_region
          %s228 = smul.u32 2, %s20
          %p229 = scmp.lt.s32.totalorder %s19, 1
          %s230 = scalar_select %p229, %s19, 1
          %p231 = scmp.lt.s32.totalorder %s228, 3
          %s232 = scalar_select %p231, %s228, 3
          %s233 = smul.addr %s232, 2
          %s234 = smul.addr %s230, 8
          %s235 = sadd.s32 %s233, %s234
          %s236 = smul.addr %s235, 4
          %s237 = scalar_lea.vmem %s0, %s236
          %s238 = smul.u32 2, %s20
        $region36: #{feature_encoder.3} parent=31 // pred_fallthru
          _
        // Predicated region
        $region37: #{feature_encoder.3} parent=31 // pred_check
          %p239 = pneg %p76
        $region38: #{feature_encoder.3} parent=31 // pred_check_branch
          %241 = sbr.rel (%p239) target = $region40
        $region39: #{feature_encoder.3} parent=31 // pred_region
          %s242 = sadd.s32 %s20, 1
          %s243 = smul.u32 2, %s242
          %p244 = scmp.lt.s32.totalorder %s19, 1
          %s245 = scalar_select %p244, %s19, 1
          %p246 = scmp.lt.s32.totalorder %s243, 3
          %s247 = scalar_select %p246, %s243, 3
          %s248 = smul.addr %s247, 2
          %s249 = smul.addr %s245, 8
          %s250 = sadd.s32 %s248, %s249
          %s251 = smul.addr %s250, 4
          %s252 = scalar_lea.vmem %s1, %s251
          %s253 = sadd.s32 %s20, 1
          %s254 = smul.u32 2, %s253
        $region40: #{feature_encoder.3} parent=31 // pred_fallthru
          _
      $region32: #{feature_encoder.3} parent=5 // pred_fallthru
        _
      %p255 = scmp.le.s32.totalorder 1, %s12
      %p256 = scmp.lt.s32.totalorder %s12, 3
      %p257 = pnand %p255, %p256
      %p258 = pneg %p257
      // Predicated region
      $region41: #{feature_encoder.3} parent=5 // pred_check
        _
      $region42: #{feature_encoder.3} parent=5 // pred_check_branch
        %260 = sbr.rel (%p257) target = $region44
      $region43: #{feature_encoder.3} parent=5 // pred_region
        %s261 = ssub.s32 %s12, 1
        %s262 = smul.u32 2, %s22
        %p263 = scmp.lt.s32.totalorder %s21, 1
        %s264 = scalar_select %p263, %s21, 1
        %p265 = scmp.lt.s32.totalorder %s262, 3
        %s266 = scalar_select %p265, %s262, 3
        %s267 = smul.addr %s266, 2
        %s268 = smul.addr %s264, 8
        %s269 = sadd.s32 %s267, %s268
        %s270 = smul.addr %s269, 4
        %s271 = scalar_lea.vmem %s0, %s270
        %p272 = pneg %p52
        %p273 = pneg %p49
        %s274 = sadd.s32 %s22, 1
        %s275 = smul.u32 2, %s274
        %p276 = scmp.lt.s32.totalorder %s21, 1
        %s277 = scalar_select %p276, %s21, 1
        %p278 = scmp.lt.s32.totalorder %s275, 3
        %s279 = scalar_select %p278, %s275, 3
        %s280 = smul.addr %s279, 2
        %s281 = smul.addr %s277, 8
        %s282 = sadd.s32 %s280, %s281
        %s283 = smul.addr %s282, 4
        %s284 = scalar_lea.vmem %s1, %s283
        %p285 = pneg %p82
        %p286 = pneg %p79
        %p287 = pneg %p103
        %p288 = pneg %p100
        %p289 = pneg %p124
        %p290 = pneg %p121
        %p291 = pneg %p145
        %p292 = pneg %p142
        %p293 = pneg %p166
        %p294 = pneg %p163
        %p295 = pneg %p194
        %p296 = pneg %p191
        %s297 = sand.u32 %s181, 1
        %s298 = sand.u32 %s181, 1
        %s299 = smul.addr %s298, 16
        %s300 = scalar_lea.vmem [#allocation2], %s299
        %s301 = smul.u32 2, %s22
        %p302 = scmp.lt.s32.totalorder %s21, 1
        %s303 = scalar_select %p302, %s21, 1
        %p304 = scmp.lt.s32.totalorder %s301, 3
        %s305 = scalar_select %p304, %s301, 3
        %s306 = smul.addr %s305, 2
        %s307 = smul.addr %s303, 8
        %s308 = sadd.s32 %s306, %s307
        %s309 = smul.addr %s308, 4
        %s310 = scalar_lea.vmem %s0, %s309
        %s311 = smul.u32 2, %s22
        %s312 = sadd.s32 %s22, 1
        %s313 = smul.u32 2, %s312
        %p314 = scmp.lt.s32.totalorder %s21, 1
        %s315 = scalar_select %p314, %s21, 1
        %p316 = scmp.lt.s32.totalorder %s313, 3
        %s317 = scalar_select %p316, %s313, 3
        %s318 = smul.addr %s317, 2
        %s319 = smul.addr %s315, 8
        %s320 = sadd.s32 %s318, %s319
        %s321 = smul.addr %s320, 4
        %s322 = scalar_lea.vmem %s1, %s321
        %s323 = sadd.s32 %s22, 1
        %s324 = smul.u32 2, %s323
        %s325 = smul.u32 2, %s22
        %s326 = ssub.s32 1, %s325
        %s327 = smul.u32 128, %s326
        %v329 = vld [vmem:[%s310] sm:$0xff]
        %v330 = vld [vmem:[%s310 + $0x8] sm:$0xff]
        %v331 = vld [vmem:[%s2] sm:$0xf]
        %v332 = vld [vmem:[%s2 + $0x4] sm:$0xf]
        %v333 = vld [vmem:[%s2 + $0x8] sm:$0xf]
        %v334 = vld [vmem:[%s2 + $0xc] sm:$0xf]
        %v335 = vld [vmem:[%s2 + $0x10] sm:$0xf]
        %v336 = vld [vmem:[%s2 + $0x14] sm:$0xf]
        %v337 = vld [vmem:[%s2 + $0x18] sm:$0xf]
        %v338 = vld [vmem:[%s2 + $0x1c] sm:$0xf]
        %v339 = vld [vmem:[%s2 + $0x20] sm:$0xf]
        %v340 = vld [vmem:[%s2 + $0x24] sm:$0xf]
        %v341 = vld [vmem:[%s2 + $0x28] sm:$0xf]
        %v342 = vld [vmem:[%s2 + $0x2c] sm:$0xf]
        %v343 = vld [vmem:[%s2 + $0x30] sm:$0xf]
        %v344 = vld [vmem:[%s2 + $0x34] sm:$0xf]
        %v345 = vld [vmem:[%s2 + $0x38] sm:$0xf]
        %v346 = vld [vmem:[%s2 + $0x3c] sm:$0xf]
        %v347 = vld [vmem:[%s2 + $0x40] sm:$0xf]
        %v348 = vld [vmem:[%s2 + $0x44] sm:$0xf]
        %v349 = vld [vmem:[%s2 + $0x48] sm:$0xf]
        %v350 = vld [vmem:[%s2 + $0x4c] sm:$0xf]
        %v351 = vld [vmem:[%s2 + $0x50] sm:$0xf]
        %v352 = vld [vmem:[%s2 + $0x54] sm:$0xf]
        %v353 = vld [vmem:[%s2 + $0x58] sm:$0xf]
        %v354 = vld [vmem:[%s2 + $0x5c] sm:$0xf]
        %v355 = vld [vmem:[%s2 + $0x60] sm:$0xf]
        %v356 = vld [vmem:[%s2 + $0x64] sm:$0xf]
        %v357 = vld [vmem:[%s2 + $0x68] sm:$0xf]
        %v358 = vld [vmem:[%s2 + $0x6c] sm:$0xf]
        %v359 = vld [vmem:[%s2 + $0x70] sm:$0xf]
        %v360 = vld [vmem:[%s2 + $0x74] sm:$0xf]
        %v361 = vld [vmem:[%s2 + $0x78] sm:$0xf]
        %v362 = vld [vmem:[%s2 + $0x7c] sm:$0xf]
        %v363 = vld [vmem:[%s322] sm:$0xff]
        %v364 = vld [vmem:[%s322 + $0x8] sm:$0xff]
        %v365 = vlaneseq
        %v366 = vshrl.u32 %v365, 7
        %v367 = vadd.s32 %v366, 8
        %s368 = scalar_lea.vmem %s2, 128
        %v369 = vld [vmem:[%s368] sm:$0xf]
        %v370 = vld [vmem:[%s368 + $0x4] sm:$0xf]
        %v371 = vld [vmem:[%s368 + $0x8] sm:$0xf]
        %v372 = vld [vmem:[%s368 + $0xc] sm:$0xf]
        %v373 = vld [vmem:[%s368 + $0x10] sm:$0xf]
        %v374 = vld [vmem:[%s368 + $0x14] sm:$0xf]
        %v375 = vld [vmem:[%s368 + $0x18] sm:$0xf]
        %v376 = vld [vmem:[%s368 + $0x1c] sm:$0xf]
        %v377 = vld [vmem:[%s368 + $0x20] sm:$0xf]
        %v378 = vld [vmem:[%s368 + $0x24] sm:$0xf]
        %v379 = vld [vmem:[%s368 + $0x28] sm:$0xf]
        %v380 = vld [vmem:[%s368 + $0x2c] sm:$0xf]
        %v381 = vld [vmem:[%s368 + $0x30] sm:$0xf]
        %v382 = vld [vmem:[%s368 + $0x34] sm:$0xf]
        %v383 = vld [vmem:[%s368 + $0x38] sm:$0xf]
        %v384 = vld [vmem:[%s368 + $0x3c] sm:$0xf]
        %v385 = vld [vmem:[%s368 + $0x40] sm:$0xf]
        %v386 = vld [vmem:[%s368 + $0x44] sm:$0xf]
        %v387 = vld [vmem:[%s368 + $0x48] sm:$0xf]
        %v388 = vld [vmem:[%s368 + $0x4c] sm:$0xf]
        %v389 = vld [vmem:[%s368 + $0x50] sm:$0xf]
        %v390 = vld [vmem:[%s368 + $0x54] sm:$0xf]
        %v391 = vld [vmem:[%s368 + $0x58] sm:$0xf]
        %v392 = vld [vmem:[%s368 + $0x5c] sm:$0xf]
        %v393 = vld [vmem:[%s368 + $0x60] sm:$0xf]
        %v394 = vld [vmem:[%s368 + $0x64] sm:$0xf]
        %v395 = vld [vmem:[%s368 + $0x68] sm:$0xf]
        %v396 = vld [vmem:[%s368 + $0x6c] sm:$0xf]
        %v397 = vld [vmem:[%s368 + $0x70] sm:$0xf]
        %v398 = vld [vmem:[%s368 + $0x74] sm:$0xf]
        %v399 = vld [vmem:[%s368 + $0x78] sm:$0xf]
        %v400 = vld [vmem:[%s368 + $0x7c] sm:$0xf]
        %v403 = vunpack.c.l.b16 %v329
        %v404 = vunpack.c.h.b16 %v329
        %v405 = vunpack.c.l.b16 %v330
        %v406 = vunpack.c.h.b16 %v330
        %v407 = vpack.c.b16 %v405, %v403
        %v408 = vpack.c.b16 %v406, %v404
        %v443 = vunpack.c.l.b16 %v369
        %v444 = vunpack.c.l.b16 %v370
        %v445 = vunpack.c.l.b16 %v371
        %v446 = vunpack.c.l.b16 %v372
        %v447 = vunpack.c.l.b16 %v373
        %v448 = vunpack.c.l.b16 %v374
        %v449 = vunpack.c.l.b16 %v375
        %v450 = vunpack.c.l.b16 %v376
        %v451 = vunpack.c.l.b16 %v377
        %v452 = vunpack.c.l.b16 %v378
        %v453 = vunpack.c.l.b16 %v379
        %v454 = vunpack.c.l.b16 %v380
        %v455 = vunpack.c.l.b16 %v381
        %v456 = vunpack.c.l.b16 %v382
        %v457 = vunpack.c.l.b16 %v383
        %v458 = vunpack.c.l.b16 %v384
        %v459 = vunpack.c.l.b16 %v385
        %v460 = vunpack.c.l.b16 %v386
        %v461 = vunpack.c.l.b16 %v387
        %v462 = vunpack.c.l.b16 %v388
        %v463 = vunpack.c.l.b16 %v389
        %v464 = vunpack.c.l.b16 %v390
        %v465 = vunpack.c.l.b16 %v391
        %v466 = vunpack.c.l.b16 %v392
        %v467 = vunpack.c.l.b16 %v393
        %v468 = vunpack.c.l.b16 %v394
        %v469 = vunpack.c.l.b16 %v395
        %v470 = vunpack.c.l.b16 %v396
        %v471 = vunpack.c.l.b16 %v397
        %v472 = vunpack.c.l.b16 %v398
        %v473 = vunpack.c.l.b16 %v399
        %v474 = vunpack.c.l.b16 %v400
        %v475 = vpack.c.b16 %v444, %v443
        %v476 = vpack.c.b16 %v446, %v445
        %v477 = vpack.c.b16 %v448, %v447
        %v478 = vpack.c.b16 %v450, %v449
        %v479 = vpack.c.b16 %v452, %v451
        %v480 = vpack.c.b16 %v454, %v453
        %v481 = vpack.c.b16 %v456, %v455
        %v482 = vpack.c.b16 %v458, %v457
        %v483 = vpack.c.b16 %v460, %v459
        %v484 = vpack.c.b16 %v462, %v461
        %v485 = vpack.c.b16 %v464, %v463
        %v486 = vpack.c.b16 %v466, %v465
        %v487 = vpack.c.b16 %v468, %v467
        %v488 = vpack.c.b16 %v470, %v469
        %v489 = vpack.c.b16 %v472, %v471
        %v490 = vpack.c.b16 %v474, %v473
        %507 = vmatprep.subr.bf16.mxu0 0
        %508 = vmatpush1.bf16.msra.mxu0 %v475
        %509 = vmatprep.subr.bf16.mxu0 0
        %510 = vmatpush1.bf16.msra.mxu0 %v476
        %511 = vmatprep.subr.bf16.mxu0 0
        %512 = vmatpush1.bf16.msra.mxu0 %v477
        %513 = vmatprep.subr.bf16.mxu0 0
        %514 = vmatpush1.bf16.msra.mxu0 %v478
        %515 = vmatprep.subr.bf16.mxu0 0
        %516 = vmatpush1.bf16.msra.mxu0 %v479
        %517 = vmatprep.subr.bf16.mxu0 0
        %518 = vmatpush1.bf16.msra.mxu0 %v480
        %519 = vmatprep.subr.bf16.mxu0 0
        %520 = vmatpush1.bf16.msra.mxu0 %v481
        %521 = vmatprep.subr.bf16.mxu0 0
        %522 = vmatpush1.bf16.msra.mxu0 %v482
        %523 = vmatprep.subr.bf16.mxu0 0
        %524 = vmatpush1.bf16.msra.mxu0 %v483
        %525 = vmatprep.subr.bf16.mxu0 0
        %526 = vmatpush1.bf16.msra.mxu0 %v484
        %527 = vmatprep.subr.bf16.mxu0 0
        %528 = vmatpush1.bf16.msra.mxu0 %v485
        %529 = vmatprep.subr.bf16.mxu0 0
        %530 = vmatpush1.bf16.msra.mxu0 %v486
        %531 = vmatprep.subr.bf16.mxu0 0
        %532 = vmatpush1.bf16.msra.mxu0 %v487
        %533 = vmatprep.subr.bf16.mxu0 0
        %534 = vmatpush1.bf16.msra.mxu0 %v488
        %535 = vmatprep.subr.bf16.mxu0 0
        %536 = vmatpush1.bf16.msra.mxu0 %v489
        %537 = vmatprep.subr.bf16.mxu0 0
        %538 = vmatpush1.bf16.msra.mxu0 %v490
        %539 = vmatprep.mubr.bf16.mxu0 %v408
        %540 = vmatmul.mubr.bf16.gmra.mrb[0].mxu0 %v407
        %v541 = vpop.f32.mrb[0].mxu0
        %v542 = vadd.f32 0.0, %v541
        %v543 = vpop.f32.mrb[0].mxu0
        %v544 = vpop.f32.mrb[0].mxu0
        %v545 = vadd.f32 0.0, %v544
        %v546 = vpop.f32.mrb[0].mxu0
        %547 = vdwg.mxu0
        %v548 = vrot.slane %v542, 1
        %v549 = vrot.slane %v545, 1
        %vm550 = vcmp.lt.s32.totalorder %v366, 7
        %v551 = vsel %vm550, %v548, %v549
        %v552 = vsel %vm550, %v549, %v548
        %v555 = vunpack.c.l.b16 %v363
        %v556 = vunpack.c.h.b16 %v363
        %v557 = vunpack.c.l.b16 %v364
        %v558 = vunpack.c.h.b16 %v364
        %v559 = vpack.c.b16 %v557, %v555
        %v560 = vpack.c.b16 %v558, %v556
        %563 = vmatprep.subr.bf16.mxu0 0
        %564 = vmatpush1.bf16.msra.mxu0 %v475
        %565 = vmatprep.subr.bf16.mxu0 0
        %566 = vmatpush1.bf16.msra.mxu0 %v476
        %567 = vmatprep.subr.bf16.mxu0 0
        %568 = vmatpush1.bf16.msra.mxu0 %v477
        %569 = vmatprep.subr.bf16.mxu0 0
        %570 = vmatpush1.bf16.msra.mxu0 %v478
        %571 = vmatprep.subr.bf16.mxu0 0
        %572 = vmatpush1.bf16.msra.mxu0 %v479
        %573 = vmatprep.subr.bf16.mxu0 0
        %574 = vmatpush1.bf16.msra.mxu0 %v480
        %575 = vmatprep.subr.bf16.mxu0 0
        %576 = vmatpush1.bf16.msra.mxu0 %v481
        %577 = vmatprep.subr.bf16.mxu0 0
        %578 = vmatpush1.bf16.msra.mxu0 %v482
        %579 = vmatprep.subr.bf16.mxu0 0
        %580 = vmatpush1.bf16.msra.mxu0 %v483
        %581 = vmatprep.subr.bf16.mxu0 0
        %582 = vmatpush1.bf16.msra.mxu0 %v484
        %583 = vmatprep.subr.bf16.mxu0 0
        %584 = vmatpush1.bf16.msra.mxu0 %v485
        %585 = vmatprep.subr.bf16.mxu0 0
        %586 = vmatpush1.bf16.msra.mxu0 %v486
        %587 = vmatprep.subr.bf16.mxu0 0
        %588 = vmatpush1.bf16.msra.mxu0 %v487
        %589 = vmatprep.subr.bf16.mxu0 0
        %590 = vmatpush1.bf16.msra.mxu0 %v488
        %591 = vmatprep.subr.bf16.mxu0 0
        %592 = vmatpush1.bf16.msra.mxu0 %v489
        %593 = vmatprep.subr.bf16.mxu0 0
        %594 = vmatpush1.bf16.msra.mxu0 %v490
        %595 = vmatprep.mubr.bf16.mxu0 %v560
        %596 = vmatmul.mubr.bf16.gmra.mrb[0].mxu0 %v559
        %v597 = vpop.f32.mrb[0].mxu0
        %v598 = vadd.f32 0.0, %v597
        %v599 = vpop.f32.mrb[0].mxu0
        %v600 = vpop.f32.mrb[0].mxu0
        %v601 = vpop.f32.mrb[0].mxu0
        %602 = vdwg.mxu0
        %vm603 = vcmp.lt.s32.totalorder %v366, 15
        %vm604 = vcmp.lt.s32.totalorder %v367, 15
        %v605 = vsel %vm603, 1, 0
        %v606 = vsel %vm604, 1, 0
        %vm607 = vcmp.eq.s32.totalorder %v605, 1
        %vm608 = vcmp.eq.s32.totalorder %v606, 1
        %v609 = vlaneseq
        %v610 = vshrl.u32 %v609, 7
        %v611 = vsub.s32 0, %v610
        %v612 = vrot.slane %v598, %v611
        %v613 = vsel %vm607, %v551, %v612
        %v614 = vsel %vm608, %v552, %v612
        %v647 = vunpack.c.l.b16 %v331
        %v648 = vunpack.c.l.b16 %v332
        %v649 = vunpack.c.l.b16 %v333
        %v650 = vunpack.c.l.b16 %v334
        %v651 = vunpack.c.l.b16 %v335
        %v652 = vunpack.c.l.b16 %v336
        %v653 = vunpack.c.l.b16 %v337
        %v654 = vunpack.c.l.b16 %v338
        %v655 = vunpack.c.l.b16 %v339
        %v656 = vunpack.c.l.b16 %v340
        %v657 = vunpack.c.l.b16 %v341
        %v658 = vunpack.c.l.b16 %v342
        %v659 = vunpack.c.l.b16 %v343
        %v660 = vunpack.c.l.b16 %v344
        %v661 = vunpack.c.l.b16 %v345
        %v662 = vunpack.c.l.b16 %v346
        %v663 = vunpack.c.l.b16 %v347
        %v664 = vunpack.c.l.b16 %v348
        %v665 = vunpack.c.l.b16 %v349
        %v666 = vunpack.c.l.b16 %v350
        %v667 = vunpack.c.l.b16 %v351
        %v668 = vunpack.c.l.b16 %v352
        %v669 = vunpack.c.l.b16 %v353
        %v670 = vunpack.c.l.b16 %v354
        %v671 = vunpack.c.l.b16 %v355
        %v672 = vunpack.c.l.b16 %v356
        %v673 = vunpack.c.l.b16 %v357
        %v674 = vunpack.c.l.b16 %v358
        %v675 = vunpack.c.l.b16 %v359
        %v676 = vunpack.c.l.b16 %v360
        %v677 = vunpack.c.l.b16 %v361
        %v678 = vunpack.c.l.b16 %v362
        %v679 = vpack.c.b16 %v648, %v647
        %v680 = vpack.c.b16 %v650, %v649
        %v681 = vpack.c.b16 %v652, %v651
        %v682 = vpack.c.b16 %v654, %v653
        %v683 = vpack.c.b16 %v656, %v655
        %v684 = vpack.c.b16 %v658, %v657
        %v685 = vpack.c.b16 %v660, %v659
        %v686 = vpack.c.b16 %v662, %v661
        %v687 = vpack.c.b16 %v664, %v663
        %v688 = vpack.c.b16 %v666, %v665
        %v689 = vpack.c.b16 %v668, %v667
        %v690 = vpack.c.b16 %v670, %v669
        %v691 = vpack.c.b16 %v672, %v671
        %v692 = vpack.c.b16 %v674, %v673
        %v693 = vpack.c.b16 %v676, %v675
        %v694 = vpack.c.b16 %v678, %v677
        %711 = vmatprep.subr.bf16.mxu0 0
        %712 = vmatpush1.bf16.msra.mxu0 %v679
        %713 = vmatprep.subr.bf16.mxu0 0
        %714 = vmatpush1.bf16.msra.mxu0 %v680
        %715 = vmatprep.subr.bf16.mxu0 0
        %716 = vmatpush1.bf16.msra.mxu0 %v681
        %717 = vmatprep.subr.bf16.mxu0 0
        %718 = vmatpush1.bf16.msra.mxu0 %v682
        %719 = vmatprep.subr.bf16.mxu0 0
        %720 = vmatpush1.bf16.msra.mxu0 %v683
        %721 = vmatprep.subr.bf16.mxu0 0
        %722 = vmatpush1.bf16.msra.mxu0 %v684
        %723 = vmatprep.subr.bf16.mxu0 0
        %724 = vmatpush1.bf16.msra.mxu0 %v685
        %725 = vmatprep.subr.bf16.mxu0 0
        %726 = vmatpush1.bf16.msra.mxu0 %v686
        %727 = vmatprep.subr.bf16.mxu0 0
        %728 = vmatpush1.bf16.msra.mxu0 %v687
        %729 = vmatprep.subr.bf16.mxu0 0
        %730 = vmatpush1.bf16.msra.mxu0 %v688
        %731 = vmatprep.subr.bf16.mxu0 0
        %732 = vmatpush1.bf16.msra.mxu0 %v689
        %733 = vmatprep.subr.bf16.mxu0 0
        %734 = vmatpush1.bf16.msra.mxu0 %v690
        %735 = vmatprep.subr.bf16.mxu0 0
        %736 = vmatpush1.bf16.msra.mxu0 %v691
        %737 = vmatprep.subr.bf16.mxu0 0
        %738 = vmatpush1.bf16.msra.mxu0 %v692
        %739 = vmatprep.subr.bf16.mxu0 0
        %740 = vmatpush1.bf16.msra.mxu0 %v693
        %741 = vmatprep.subr.bf16.mxu0 0
        %742 = vmatpush1.bf16.msra.mxu0 %v694
        %743 = vmatprep.mubr.bf16.mxu0 %v408
        %744 = vmatmul.mubr.bf16.gmra.mrb[0].mxu0 %v407
        %v745 = vpop.f32.mrb[0].mxu0
        %v746 = vadd.f32 %v613, %v745
        %v747 = vpop.f32.mrb[0].mxu0
        %v748 = vpop.f32.mrb[0].mxu0
        %v749 = vadd.f32 %v614, %v748
        %v750 = vpop.f32.mrb[0].mxu0
        %751 = vdwg.mxu0
        %v752 = vld [vmem:[%s3] sm:$0x1]
        %v754 = vlaneseq
        %v755 = vshrl.u32 %v754, 7
        %v756 = vsub.s32 0, %v755
        %v757 = vrot.slane %v752, %v756
        %v759 = vadd.f32 %v746, %v757
        %v760 = vadd.f32 %v749, %v757
        %761 = vadd.xlane.f32.xlu0 %v759
        %v762 = vpop.xlane.xlu0 %761
        %763 = vadd.xlane.f32.xlu0 %v760
        %v764 = vpop.xlane.xlu0 %763
        %v765 = vmul.f32 %v762, 0.03125
        %v766 = vmul.f32 %v764, 0.03125
        %v767 = vsub.f32 %v759, %v765
        %v768 = vsub.f32 %v760, %v766
        %v769 = vlaneseq
        %v770 = vand.u32 %v769, 127
        %vm771 = vcmp.lt.s32.totalorder %v770, 32
        %v772 = vsel %vm771, 1, 0
        %vm773 = vcmp.eq.s32.totalorder %v772, 1
        %v774 = vsel %vm773, %v767, 0.0
        %v775 = vsel %vm773, %v768, 0.0
        %v776 = vmul.f32 %v774, %v774
        %v777 = vmul.f32 %v775, %v775
        %778 = vadd.xlane.f32.xlu0 %v776
        %v779 = vpop.xlane.xlu0 %778
        %780 = vadd.xlane.f32.xlu0 %v777
        %v781 = vpop.xlane.xlu0 %780
        %v782 = vmul.f32 %v779, 0.03125
        %v783 = vmul.f32 %v781, 0.03125
        %v784 = vadd.f32 %v782, 1e-05
        %v785 = vadd.f32 %v783, 1e-05
        %v786 = vrsqrt.pop %v784
        %v787 = vrsqrt.pop %v785
        %v788 = vmul.f32 %v774, %v786
        %v789 = vmul.f32 %v775, %v787
        %v790 = vld [vmem:[%s4] sm:$0x1]
        %v792 = vlaneseq
        %v793 = vshrl.u32 %v792, 7
        %v794 = vsub.s32 0, %v793
        %v795 = vrot.slane %v790, %v794
        %v797 = vmul.f32 %v788, %v795
        %v798 = vmul.f32 %v789, %v795
        %v799 = vld [vmem:[%s5] sm:$0x1]
        %v801 = vlaneseq
        %v802 = vshrl.u32 %v801, 7
        %v803 = vsub.s32 0, %v802
        %v804 = vrot.slane %v799, %v803
        %v806 = vadd.f32 %v797, %v804
        %v807 = vadd.f32 %v798, %v804
        %v808 = vmul.f32 %v806, 0.5
        %v809 = vmul.f32 %v807, 0.5
        %v810 = vmul.f32 %v806, 0.70710677
        %v811 = vmul.f32 %v807, 0.70710677
        %v812 = verf.f32.pop %v810
        %v813 = verf.f32.pop %v811
        %v814 = vadd.f32 %v812, 1.0
        %v815 = vadd.f32 %v813, 1.0
        %v816 = vmul.f32 %v808, %v814
        %v817 = vmul.f32 %v809, %v815
        %818 = vst [vmem:[%s300] sm:$0xff] %v816
        %819 = vst [vmem:[%s300 + $0x8] sm:$0xff] %v817
        %s820 = sand.u32 %s181, 1
        %s821 = sand.u32 %s181, 1
        %s822 = smul.addr %s821, 16
        %s823 = scalar_lea.vmem [#allocation2], %s822
        // Predicated region
        $region45: #{feature_encoder.3} parent=43 // pred_check
          %p824 = pneg %p191
        $region46: #{feature_encoder.3} parent=43 // pred_check_branch
          %826 = sbr.rel (%p824) target = $region48
        $region47: #{feature_encoder.3} parent=43 // pred_region
          %s827 = smul.u32 2, %s22
          %s828 = ssub.s32 1, %s827
          %s829 = smul.u32 128, %s828
          %p830 = scmp.ne.s32.totalorder 0, %s829
          %s831 = sadd.s32 %s827, %s21
          %s832 = smul.addr %s831, 8
          %s833 = scalar_lea.vmem %s6, %s832
          // Predicated region
          $region49: #{feature_encoder.3} parent=47 // pred_check
            %p834 = pneg %p830
          $region50: #{feature_encoder.3} parent=47 // pred_check_branch
            %836 = sbr.rel (%p834) target = $region52
          $region51: #{feature_encoder.3} parent=47 // pred_region
            // Predicated region
            $region53: #{feature_encoder.3} parent=51 // pred_check
              _
            $region54: #{feature_encoder.3} parent=51 // pred_check_branch
              %838 = sbr.rel (0) target = $region56
            $region55: #{feature_encoder.3} parent=51 // pred_region
              // Predicated region
              $region68: #{feature_encoder.3} parent=55 // pred_check
                _
              $region69: #{feature_encoder.3} parent=55 // pred_check_branch
                %861 = sbr.rel (0) target = $region71
              $region70: #{feature_encoder.3} parent=55 // pred_region
                // While loop
                $region72: #{feature_encoder.3} parent=70 // loop_pre_header
                  _
                $region73: #{feature_encoder.3} parent=70 // loop_header
                  %s863 = sphi 0, %s865
                  %p864 = scmp.ge.s32.totalorder %s863, %s828
                  %s868 = sphi 0, %s875
                  %s869 = sphi %s823, %s878
                  %s870 = sphi %s833, %s879
                $region74: #{feature_encoder.3} parent=70 // loop_header_branch
                  %867 = sbr.rel (%p864) target = $region78
                $region75: #{feature_encoder.3} parent=70 // loop_body
                  %v871 = vld [vmem:[%s869] sm:$0xff]
                  %872 = vst [vmem:[%s870] sm:$0xff] %v871
                  %s873 = sadd.s32 1, %s868
                  %p874 = scmp.ge.s32.totalorder %s873, %s828
                  %s875 = scalar_select %p874, 0, %s873
                  %s876 = smul.u32 %s875, 8
                  %s877 = smul.u32 %s875, 8
                  %s878 = scalar_lea.vmem %s823, %s876 [#allocation2]
                  %s879 = scalar_lea.vmem %s833, %s877
                $region76: #{feature_encoder.3} parent=70 // loop_footer
                  %s865 = sadd.s32 %s863, 1
                $region77: #{feature_encoder.3} parent=70 // loop_footer_branch
                  %862 = sbr.rel target = $region73
                $region78: #{feature_encoder.3} parent=70 // loop_exit
                  _
              $region71: #{feature_encoder.3} parent=55 // pred_fallthru
                _
              // Predicated region
              $region79: #{feature_encoder.3} parent=55 // pred_check
                _
              $region80: #{feature_encoder.3} parent=55 // pred_check_branch
                %881 = sbr.rel target = $region82
              $region81: #{feature_encoder.3} parent=55 // pred_region
                _
              $region82: #{feature_encoder.3} parent=55 // pred_fallthru
                _
            $region56: #{feature_encoder.3} parent=51 // pred_fallthru
              _
            // Predicated region
            $region57: #{feature_encoder.3} parent=51 // pred_check
              _
            $region58: #{feature_encoder.3} parent=51 // pred_check_branch
              %840 = sbr.rel target = $region60
            $region59: #{feature_encoder.3} parent=51 // pred_region
              // While loop
              $region61: #{feature_encoder.3} parent=59 // loop_pre_header
                _
              $region62: #{feature_encoder.3} parent=59 // loop_header
                %s843 = sphi 0, %s845
                %p844 = scmp.ge.s32.totalorder %s843, %s828
                %s848 = sphi 0, %s855
                %s849 = sphi %s823, %s858
                %s850 = sphi %s833, %s859
              $region63: #{feature_encoder.3} parent=59 // loop_header_branch
                %847 = sbr.rel (%p844) target = $region67
              $region64: #{feature_encoder.3} parent=59 // loop_body
                %v851 = vld [vmem:[%s849] sm:$0xff]
                %852 = vst [vmem:[%s850] sm:$0xff] %v851
                %s853 = sadd.s32 1, %s848
                %p854 = scmp.ge.s32.totalorder %s853, %s828
                %s855 = scalar_select %p854, 0, %s853
                %s856 = smul.u32 %s855, 8
                %s857 = smul.u32 %s855, 8
                %s858 = scalar_lea.vmem %s823, %s856 [#allocation2]
                %s859 = scalar_lea.vmem %s833, %s857
              $region65: #{feature_encoder.3} parent=59 // loop_footer
                %s845 = sadd.s32 %s843, 1
              $region66: #{feature_encoder.3} parent=59 // loop_footer_branch
                %842 = sbr.rel target = $region62
              $region67: #{feature_encoder.3} parent=59 // loop_exit
                _
            $region60: #{feature_encoder.3} parent=51 // pred_fallthru
              _
          $region52: #{feature_encoder.3} parent=47 // pred_fallthru
            _
          %882 = vnop
        $region48: #{feature_encoder.3} parent=43 // pred_fallthru
          _
      $region44: #{feature_encoder.3} parent=5 // pred_fallthru
        _
      %p883 = scmp.le.s32.totalorder 2, %s12
      // Predicated region
      $region83: #{feature_encoder.3} parent=5 // pred_check
        %p884 = pneg %p883
      $region84: #{feature_encoder.3} parent=5 // pred_check_branch
        %886 = sbr.rel (%p884) target = $region86
      $region85: #{feature_encoder.3} parent=5 // pred_region
        %s887 = ssub.s32 %s12, 2
        // Predicated region
        $region87: #{feature_encoder.3} parent=85 // pred_check
          %p888 = pneg %p197
        $region88: #{feature_encoder.3} parent=85 // pred_check_branch
          %890 = sbr.rel (%p888) target = $region90
        $region89: #{feature_encoder.3} parent=85 // pred_region
          %s891 = sand.u32 %s182, 1
          %s892 = sand.u32 %s182, 1
          %s893 = smul.addr %s892, 16
          %s894 = scalar_lea.vmem [#allocation2], %s893
        $region90: #{feature_encoder.3} parent=85 // pred_fallthru
          _
      $region86: #{feature_encoder.3} parent=5 // pred_fallthru
        _
    $region6: #{feature_encoder.3} parent=1 // loop_footer
      %s16 = sadd.s32 1, %s12
    $region7: #{feature_encoder.3} parent=1 // loop_footer_branch
      %11 = sbr.rel target = $region3
    $region8: #{feature_encoder.3} parent=1 // loop_exit
      _

</llo_original>
